<compile_context>
chip_gen: v7x
topology: tpu7x:2x2x1
jax: 0.10.0
libtpu: 0.0.40
codegen_flags: <defaults>
</compile_context>

<pallas_src>
import jax
import jax.numpy as jnp
from jax import lax
from jax.experimental import pallas as pl

# ---------------- small, self-consistent config ----------------
B, S = 2, 8                 # batch, seq_len
N = B * S                   # 16 tokens (flattened, row n -> (b = n // S, s = n % S))
D = 64                      # hidden_size
H = 4                       # num_attention_heads
KV = 2                      # num_key_value_heads
HD = D // H                 # head_dim = 16
LAT = HD // 4               # latent_dim = 4
HL = H * LAT                # 16 (all heads' latents, flattened)
INTER = 128                 # intermediate_size
E = 4                       # num_experts
TOPK = 2                    # num_experts_per_token
MAXPOS = 64                 # max_position_embeddings
CAPACITY = int(1.25 * (MAXPOS / E))   # 20 >= B*S=16 -> capacity never truncates
EPS = 1e-5
THETA = 10000.0

QW = H * HD                 # 64  fused q width
KW = KV * HD                # 32  fused k width
VW = KV * HD                # 32  fused v width
PW = QW + KW + VW           # 128 fused q|k|v width (lane-dense)
EIW = E * INTER             # 512 all experts' intermediate width
GUW = 2 * EIW               # 1024 fused gate|up width


# ---------------- the single fused Pallas kernel ----------------
def decoder_layer_kernel(x_ref, w_in_ref, w_post_ref, w_qkv2_ref, cos_ref, sin_ref,
                         w_lat_ref, g_mat_ref, latw_ref, bmask_ref, w_attn_out_ref,
                         w_gate_ref, w_gu_ref, exp_mat_ref, w_down_ref, out_ref):
    f32 = jnp.float32
    x = x_ref[...]                                                     # (N, D)

    # ---- input RMSNorm ----
    var = jnp.mean(x * x, axis=-1, keepdims=True)
    xn = (x * lax.rsqrt(var + EPS)) * w_in_ref[...]

    # ---- fused q|k|v projection + rotate-half-permuted copy (one 256-lane matmul) ----
    proj2 = jnp.dot(xn, w_qkv2_ref[...], preferred_element_type=f32)   # (N, 2*PW)
    proj = proj2[:, :PW]                                               # [q | k | v]
    proj_perm = proj2[:, PW:]                                          # per-head half-swapped q|k (v cols are 0)

    # RoPE: out = x*cos + rotate_half(x)*sin   (cos=1, sin=0 on the v columns)
    rot = proj * cos_ref[...] + proj_perm * sin_ref[...]               # (N, PW)

    # ---- per-head latent projections via one block-diagonal matmul -> [ql | kl | vl] ----
    lat = jnp.dot(rot, w_lat_ref[...], preferred_element_type=f32)     # (N, 3*HL) = (N, 48)

    # latent RMSNorm per LAT-wide head group (group mean of squares via matmul)
    gvar = jnp.dot(lat * lat, g_mat_ref[...], preferred_element_type=f32)
    lat_n = (lat * lax.rsqrt(gvar + EPS)) * latw_ref[...]

    # elu(x)+1 on q/k latents only (first 2*HL columns)
    col = lax.broadcasted_iota(jnp.int32, lat_n.shape, 1)
    elu1 = jnp.where(lat_n > 0, lat_n + 1.0, jnp.exp(lat_n))
    lat_a = jnp.where(col < 2 * HL, elu1, lat_n)                       # (N, 48)

    # ---- linear attention: per-batch kv = k^T v; keep only same-head (LAT x LAT) blocks ----
    qkv_rows = []
    for b in range(B):                                                 # static, B = 2
        r0, r1 = b * S, (b + 1) * S
        qlb = lat_a[r0:r1, 0:HL]                                       # (S, HL)
        klb = lat_a[r0:r1, HL:2 * HL]
        vlb = lat_a[r0:r1, 2 * HL:3 * HL]
        kvb = lax.dot_general(klb, vlb, (((0,), (0,)), ((), ())),
                              preferred_element_type=f32)              # (HL, HL)
        kvb = kvb * bmask_ref[...]                                     # zero cross-head blocks
        qkv_rows.append(jnp.dot(qlb, kvb, preferred_element_type=f32) * (1.0 / S))
    qkv_f = jnp.concatenate(qkv_rows, axis=0)                          # (N, HL)

    # folded lat_out_proj @ o_proj, residual add
    attn = jnp.dot(qkv_f, w_attn_out_ref[...], preferred_element_type=f32)   # (N, D)
    out1 = x + attn

    # ---- post-attention RMSNorm ----
    var2 = jnp.mean(out1 * out1, axis=-1, keepdims=True)
    hn = (out1 * lax.rsqrt(var2 + EPS)) * w_post_ref[...]

    # ---- router: top-2 by rank counting (capacity 20 >= N=16 never truncates) ----
    logits = jnp.dot(hn, w_gate_ref[...], preferred_element_type=f32)  # (N, E)
    cnt = jnp.zeros_like(logits)
    for j in range(E):                                                 # static, E = 4
        cnt = cnt + (logits[:, j:j + 1] > logits).astype(f32)
    mask = (cnt < float(TOPK)).astype(f32)                             # (N, E) in {0,1}

    # ---- MoE: all experts fused; reference adds UN-weighted expert outputs ----
    gu = jnp.dot(hn.astype(jnp.bfloat16), w_gu_ref[...],
                 preferred_element_type=f32)                           # (N, 1024)
    g = gu[:, :EIW]
    u = gu[:, EIW:]
    act = (g * jax.nn.sigmoid(g)) * u                                  # SiLU(gate) * up, (N, 512)
    mask_exp = jnp.dot(mask, exp_mat_ref[...], preferred_element_type=f32)   # (N, 512)
    moe = jnp.dot((act * mask_exp).astype(jnp.bfloat16), w_down_ref[...],
                  preferred_element_type=f32)                          # (N, D) sums experts

    out_ref[...] = out1 + moe


# ---------------- wrapper: one-time weight fusion + single pallas_call ----------------
def prepare_params(p):
    """Fold/fuse raw weights into lane-dense kernel operands (done once, outside jit)."""
    f32 = jnp.float32
    rep = H // KV
    half = HD // 2

    # fused q|k|v projection and a copy with the per-head rotate-half permutation baked in
    w_qkv = jnp.concatenate([p['wq'], p['wk'], p['wv']], axis=1)          # (D, PW)
    swap = jnp.zeros((HD, HD), f32)
    swap = swap.at[half:, :half].set(jnp.eye(half, dtype=f32))            # out[:half]  <- x2
    swap = swap.at[:half, half:].set(jnp.eye(half, dtype=f32))            # out[half:]  <- x1
    p_full = jnp.zeros((PW, PW), f32)
    p_full = p_full.at[:QW, :QW].set(jnp.kron(jnp.eye(H, dtype=f32), swap))
    p_full = p_full.at[QW:QW + KW, QW:QW + KW].set(jnp.kron(jnp.eye(KV, dtype=f32), swap))
    w_qkv2 = jnp.concatenate([w_qkv, w_qkv @ p_full], axis=1)             # (D, 2*PW) = (64, 256)

    # full-width RoPE tables per token row (v columns: cos = 1, sin = 0)
    cos_h = jnp.concatenate([p['cos'], p['cos']], axis=1)                 # (S, HD)
    sin_h = jnp.concatenate([-p['sin'], p['sin']], axis=1)                # (S, HD)
    cos_row = jnp.concatenate([jnp.tile(cos_h, (1, H)), jnp.tile(cos_h, (1, KV)),
                               jnp.ones((S, VW), f32)], axis=1)           # (S, PW)
    sin_row = jnp.concatenate([jnp.tile(sin_h, (1, H)), jnp.tile(sin_h, (1, KV)),
                               jnp.zeros((S, VW), f32)], axis=1)
    cos_full = jnp.tile(cos_row, (B, 1))                                  # (N, PW)
    sin_full = jnp.tile(sin_row, (B, 1))

    # block-diagonal latent projection [q|k|v] -> [ql|kl|vl]; GQA repeat folded in
    w_lat = jnp.zeros((PW, 3 * HL), f32)
    for h in range(H):
        kvh = h // rep
        w_lat = w_lat.at[h * HD:(h + 1) * HD, h * LAT:(h + 1) * LAT].set(p['wql'])
        w_lat = w_lat.at[QW + kvh * HD:QW + (kvh + 1) * HD,
                         HL + h * LAT:HL + (h + 1) * LAT].set(p['wkl'])
        w_lat = w_lat.at[QW + KW + kvh * HD:QW + KW + (kvh + 1) * HD,
                         2 * HL + h * LAT:2 * HL + (h + 1) * LAT].set(p['wvl'])

    # group-average matrix for the per-head latent RMSNorm + tiled latent-norm weight
    g_mat = jnp.kron(jnp.eye(3 * H, dtype=f32), jnp.full((LAT, LAT), 1.0 / LAT, f32))  # (48, 48)
    latw48 = jnp.tile(p['latw'], (1, 3 * H))                              # (1, 48)

    # same-head block mask for the (HL, HL) kv contraction
    bmask = jnp.kron(jnp.eye(H, dtype=f32), jnp.ones((LAT, LAT), f32))    # (HL, HL)

    # folded lat_out_proj @ o_proj : (HL, D)
    w_attn_out = jnp.concatenate(
        [p['wlo'] @ p['wo'][h * HD:(h + 1) * HD, :] for h in range(H)], axis=0)

    # MoE: all experts' gate|up fused, stacked down-proj, mask expander
    wg_cat = jnp.transpose(p['wg_s'], (1, 0, 2)).reshape(D, EIW)          # (D, 512)
    wu_cat = jnp.transpose(p['wu_s'], (1, 0, 2)).reshape(D, EIW)
    w_gu = jnp.concatenate([wg_cat, wu_cat], axis=1)                      # (D, 1024)
    w_down = p['wd_s'].reshape(EIW, D)                                    # (512, D)
    exp_mat = jnp.kron(jnp.eye(E, dtype=f32), jnp.ones((1, INTER), f32))  # (E, 512)

    return {
        'w_in': p['ln_in'], 'w_post': p['post'],
        'w_qkv2': w_qkv2, 'cos_full': cos_full, 'sin_full': sin_full,
        'w_lat': w_lat, 'g_mat': g_mat, 'latw48': latw48, 'bmask': bmask,
        'w_attn_out': w_attn_out, 'w_gate': p['wgate'],
        # bf16 only for the big expert bank (halves its HBM->VMEM bytes); router
        # logits and all elementwise math stay f32 (keeps top-k bit-stable, v5e-safe).
        'w_gu': w_gu.astype(jnp.bfloat16), 'exp_mat': exp_mat,
        'w_down': w_down.astype(jnp.bfloat16),
    }


def decoder_layer(x, dp):
    out = pl.pallas_call(
        decoder_layer_kernel,
        out_shape=jax.ShapeDtypeStruct((N, D), jnp.float32),
    )(x.reshape(N, D), dp['w_in'], dp['w_post'], dp['w_qkv2'], dp['cos_full'],
      dp['sin_full'], dp['w_lat'], dp['g_mat'], dp['latw48'], dp['bmask'],
      dp['w_attn_out'], dp['w_gate'], dp['w_gu'], dp['exp_mat'], dp['w_down'])
    return out.reshape(B, S, D)


# ---------------- routing + pure-JAX reference for verification ----------------
def route(logits):
    """{0,1} mask (B,S,E): token routed to expert (top-k with capacity truncation,
    matching the reference). Expert outputs are added UN-weighted by the reference."""
    probs = jax.nn.softmax(logits, axis=-1)
    _, top_idx = lax.top_k(probs, TOPK)
    sel = jnp.any(top_idx[..., None] == jnp.arange(E), axis=-2)
    sel_f = sel.reshape(B * S, E)
    probs_f = probs.reshape(B * S, E)
    imp = jnp.where(sel_f, probs_f, -jnp.inf)
    order = jnp.argsort(-imp, axis=0)
    ranks = jnp.argsort(order, axis=0)
    keep = sel_f & (ranks < CAPACITY)
    return keep.reshape(B, S, E).astype(jnp.float32)


def reference_forward(x, p):
    def rms(t, w, eps=EPS):
        var = jnp.mean(t * t, axis=-1, keepdims=True)
        return w * (t * lax.rsqrt(var + eps))

    xn = rms(x, p['ln_in'])
    q = (xn @ p['wq']).reshape(B, S, H, HD)
    k = (xn @ p['wk']).reshape(B, S, KV, HD)
    v = (xn @ p['wv']).reshape(B, S, KV, HD)
    cos = p['cos'][None, :, None, :]
    sin = p['sin'][None, :, None, :]

    def rope(t):
        t1, t2 = t[..., :HD // 2], t[..., HD // 2:]
        return jnp.concatenate([t1 * cos - t2 * sin, t2 * cos + t1 * sin], axis=-1)

    q, k = rope(q), rope(k)
    rep = H // KV
    k = jnp.repeat(k, rep, axis=2)
    v = jnp.repeat(v, rep, axis=2)
    ql = rms(q @ p['wql'], p['latw'])
    kl = rms(k @ p['wkl'], p['latw'])
    vl = rms(v @ p['wvl'], p['latw'])
    ql = jnp.transpose(ql, (0, 2, 1, 3))
    kl = jnp.transpose(kl, (0, 2, 1, 3))
    vl = jnp.transpose(vl, (0, 2, 1, 3))
    ql = jnp.where(ql > 0, ql + 1.0, jnp.exp(ql))
    kl = jnp.where(kl > 0, kl + 1.0, jnp.exp(kl))
    kvm = jnp.einsum('bhsl,bhsm->bhlm', kl, vl)
    qkv = jnp.einsum('bhsl,bhlm->bhsm', ql, kvm) / float(S)
    oh = qkv @ p['wlo']
    oh = jnp.transpose(oh, (0, 2, 1, 3)).reshape(B, S, H * HD)
    out1 = x + oh @ p['wo']
    hn = rms(out1, p['post'])
    logits = hn @ p['wgate']
    mask = route(logits)
    moe = jnp.zeros_like(out1)
    for e in range(E):
        g = hn @ p['wg_s'][e]
        u = hn @ p['wu_s'][e]
        eo = (g * jax.nn.sigmoid(g) * u) @ p['wd_s'][e]
        moe = moe + mask[..., e:e + 1] * eo
    return out1 + moe


# ---------------- deterministic parameter init ----------------
def make_params(key):
    ks = jax.random.split(key, 12)
    std = 0.02
    pos = jnp.arange(S, dtype=jnp.float32)[:, None]
    div = THETA ** (jnp.arange(0, HD, 2, dtype=jnp.float32) / HD)
    freqs = pos / div                                           # (S, HD//2)
    return {
        'ln_in': jnp.ones((1, D), jnp.float32),
        'post': jnp.ones((1, D), jnp.float32),
        'latw': jnp.ones((1, LAT), jnp.float32),
        'wq': jax.random.normal(ks[0], (D, H * HD), jnp.float32) * std,
        'wk': jax.random.normal(ks[1], (D, KV * HD), jnp.float32) * std,
        'wv': jax.random.normal(ks[2], (D, KV * HD), jnp.float32) * std,
        'wql': jax.random.normal(ks[3], (HD, LAT), jnp.float32) * std,
        'wkl': jax.random.normal(ks[4], (HD, LAT), jnp.float32) * std,
        'wvl': jax.random.normal(ks[5], (HD, LAT), jnp.float32) * std,
        'wlo': jax.random.normal(ks[6], (LAT, HD), jnp.float32) * std,
        'wo': jax.random.normal(ks[7], (H * HD, D), jnp.float32) * std,
        'wgate': jax.random.normal(ks[8], (D, E), jnp.float32) * std,
        'wg_s': jax.random.normal(ks[9], (E, D, INTER), jnp.float32) * std,
        'wu_s': jax.random.normal(ks[10], (E, D, INTER), jnp.float32) * std,
        'wd_s': jax.random.normal(ks[11], (E, INTER, D), jnp.float32) * std,
        'cos': jnp.cos(freqs),
        'sin': jnp.sin(freqs),
    }


if __name__ == "__main__":
    key = jax.random.PRNGKey(0)
    kx, kp = jax.random.split(key)
    params = make_params(kp)
    x = jax.random.normal(kx, (B, S, D), jnp.float32)

    dparams = prepare_params(params)            # one-time weight fusion (outside jit)
    out = jax.jit(decoder_layer)(x, dparams)
    out = jax.block_until_ready(out)

    ref = reference_forward(x, params)
    err = float(jnp.max(jnp.abs(out - ref)))
    assert out.shape == (B, S, D)
    assert err < 2e-2, f"max abs error {err} too large"
    print("KERNEL_OK")
</pallas_src>

<mosaic_0001>
module attributes {stable_mosaic.version = 11 : i64} {
  func.func @decoder_layer_kernel(%arg0: memref<16x64xf32, #tpu.memory_space<vmem>>, %arg1: memref<1x64xf32, #tpu.memory_space<vmem>>, %arg2: memref<1x64xf32, #tpu.memory_space<vmem>>, %arg3: memref<64x256xf32, #tpu.memory_space<vmem>>, %arg4: memref<16x128xf32, #tpu.memory_space<vmem>>, %arg5: memref<16x128xf32, #tpu.memory_space<vmem>>, %arg6: memref<128x48xf32, #tpu.memory_space<vmem>>, %arg7: memref<48x48xf32, #tpu.memory_space<vmem>>, %arg8: memref<1x48xf32, #tpu.memory_space<vmem>>, %arg9: memref<16x16xf32, #tpu.memory_space<vmem>>, %arg10: memref<16x64xf32, #tpu.memory_space<vmem>>, %arg11: memref<64x4xf32, #tpu.memory_space<vmem>>, %arg12: memref<64x1024xbf16, #tpu.memory_space<vmem>>, %arg13: memref<4x512xf32, #tpu.memory_space<vmem>>, %arg14: memref<512x64xbf16, #tpu.memory_space<vmem>>, %arg15: memref<16x64xf32, #tpu.memory_space<vmem>>) attributes {dimension_semantics = [], scalar_prefetch = 0 : i64, scratch_operands = 0 : i64, tpu.core_type = #tpu.core_type<tc>} {
    %c0 = arith.constant 0 : index
    %c0_0 = arith.constant 0 : index
    %0 = vector.load %arg0[%c0, %c0_0] : memref<16x64xf32, #tpu.memory_space<vmem>>, vector<16x64xf32>
    %1 = arith.mulf %0, %0 : vector<16x64xf32>
    %cst = arith.constant dense<0.000000e+00> : vector<16xf32>
    %2 = vector.multi_reduction <add>, %1, %cst [1] : vector<16x64xf32> to vector<16xf32>
    %3 = vector.shape_cast %2 : vector<16xf32> to vector<16x1xf32>
    %cst_1 = arith.constant 6.400000e+01 : f32
    %4 = vector.broadcast %cst_1 : f32 to vector<16x1xf32>
    %5 = arith.divf %3, %4 : vector<16x1xf32>
    %cst_2 = arith.constant 9.99999974E-6 : f32
    %6 = vector.broadcast %cst_2 : f32 to vector<16x1xf32>
    %7 = arith.addf %5, %6 : vector<16x1xf32>
    %8 = math.rsqrt %7 : vector<16x1xf32>
    %9 = vector.broadcast %8 : vector<16x1xf32> to vector<16x64xf32>
    %10 = arith.mulf %0, %9 : vector<16x64xf32>
    %c0_3 = arith.constant 0 : index
    %c0_4 = arith.constant 0 : index
    %11 = vector.load %arg1[%c0_3, %c0_4] : memref<1x64xf32, #tpu.memory_space<vmem>>, vector<1x64xf32>
    %12 = vector.broadcast %11 : vector<1x64xf32> to vector<16x64xf32>
    %13 = arith.mulf %10, %12 : vector<16x64xf32>
    %c0_5 = arith.constant 0 : index
    %c0_6 = arith.constant 0 : index
    %14 = vector.load %arg3[%c0_5, %c0_6] : memref<64x256xf32, #tpu.memory_space<vmem>>, vector<64x256xf32>
    %cst_7 = arith.constant dense<0.000000e+00> : vector<16x256xf32>
    %15 = tpu.matmul %13, %14, %cst_7 {dimension_numbers = #tpu.dot_dimension_numbers<[1], [0], [0], [1], [0, 0, 1, 1], [], []>} : vector<16x64xf32>, vector<64x256xf32>, vector<16x256xf32> -> vector<16x256xf32>
    %16 = vector.extract_strided_slice %15 {offsets = [0, 0], sizes = [16, 128], strides = [1, 1]} : vector<16x256xf32> to vector<16x128xf32>
    %17 = vector.extract_strided_slice %15 {offsets = [0, 128], sizes = [16, 128], strides = [1, 1]} : vector<16x256xf32> to vector<16x128xf32>
    %c0_8 = arith.constant 0 : index
    %c0_9 = arith.constant 0 : index
    %18 = vector.load %arg4[%c0_8, %c0_9] : memref<16x128xf32, #tpu.memory_space<vmem>>, vector<16x128xf32>
    %19 = arith.mulf %16, %18 : vector<16x128xf32>
    %c0_10 = arith.constant 0 : index
    %c0_11 = arith.constant 0 : index
    %20 = vector.load %arg5[%c0_10, %c0_11] : memref<16x128xf32, #tpu.memory_space<vmem>>, vector<16x128xf32>
    %21 = arith.mulf %17, %20 : vector<16x128xf32>
    %22 = arith.addf %19, %21 : vector<16x128xf32>
    %c0_12 = arith.constant 0 : index
    %c0_13 = arith.constant 0 : index
    %23 = vector.load %arg6[%c0_12, %c0_13] : memref<128x48xf32, #tpu.memory_space<vmem>>, vector<128x48xf32>
    %cst_14 = arith.constant dense<0.000000e+00> : vector<16x48xf32>
    %24 = tpu.matmul %22, %23, %cst_14 {dimension_numbers = #tpu.dot_dimension_numbers<[1], [0], [0], [1], [0, 0, 1, 1], [], []>} : vector<16x128xf32>, vector<128x48xf32>, vector<16x48xf32> -> vector<16x48xf32>
    %25 = arith.mulf %24, %24 : vector<16x48xf32>
    %c0_15 = arith.constant 0 : index
    %c0_16 = arith.constant 0 : index
    %26 = vector.load %arg7[%c0_15, %c0_16] : memref<48x48xf32, #tpu.memory_space<vmem>>, vector<48x48xf32>
    %cst_17 = arith.constant dense<0.000000e+00> : vector<16x48xf32>
    %27 = tpu.matmul %25, %26, %cst_17 {dimension_numbers = #tpu.dot_dimension_numbers<[1], [0], [0], [1], [0, 0, 1, 1], [], []>} : vector<16x48xf32>, vector<48x48xf32>, vector<16x48xf32> -> vector<16x48xf32>
    %cst_18 = arith.constant 9.99999974E-6 : f32
    %28 = vector.broadcast %cst_18 : f32 to vector<16x48xf32>
    %29 = arith.addf %27, %28 : vector<16x48xf32>
    %30 = math.rsqrt %29 : vector<16x48xf32>
    %31 = arith.mulf %24, %30 : vector<16x48xf32>
    %c0_19 = arith.constant 0 : index
    %c0_20 = arith.constant 0 : index
    %32 = vector.load %arg8[%c0_19, %c0_20] : memref<1x48xf32, #tpu.memory_space<vmem>>, vector<1x48xf32>
    %33 = vector.broadcast %32 : vector<1x48xf32> to vector<16x48xf32>
    %34 = arith.mulf %31, %33 : vector<16x48xf32>
    %35 = tpu.iota {dimensions = array<i32: 1>} : vector<16x48xi32>
    %cst_21 = arith.constant 0.000000e+00 : f32
    %36 = vector.broadcast %cst_21 : f32 to vector<16x48xf32>
    %37 = arith.cmpf ogt, %34, %36 : vector<16x48xf32>
    %cst_22 = arith.constant 1.000000e+00 : f32
    %38 = vector.broadcast %cst_22 : f32 to vector<16x48xf32>
    %39 = arith.addf %34, %38 : vector<16x48xf32>
    %40 = math.exp %34 : vector<16x48xf32>
    %41 = arith.select %37, %39, %40 : vector<16x48xi1>, vector<16x48xf32>
    %c32_i32 = arith.constant 32 : i32
    %42 = vector.broadcast %c32_i32 : i32 to vector<16x48xi32>
    %43 = arith.cmpi slt, %35, %42 : vector<16x48xi32>
    %44 = arith.select %43, %41, %34 : vector<16x48xi1>, vector<16x48xf32>
    %45 = vector.extract_strided_slice %44 {offsets = [0, 0], sizes = [8, 16], strides = [1, 1]} : vector<16x48xf32> to vector<8x16xf32>
    %46 = vector.extract_strided_slice %44 {offsets = [0, 16], sizes = [8, 16], strides = [1, 1]} : vector<16x48xf32> to vector<8x16xf32>
    %47 = vector.extract_strided_slice %44 {offsets = [0, 32], sizes = [8, 16], strides = [1, 1]} : vector<16x48xf32> to vector<8x16xf32>
    %cst_23 = arith.constant dense<0.000000e+00> : vector<16x16xf32>
    %48 = tpu.matmul %46, %47, %cst_23 {dimension_numbers = #tpu.dot_dimension_numbers<[0], [0], [1], [1], [0, 1, 1, 1], [], []>} : vector<8x16xf32>, vector<8x16xf32>, vector<16x16xf32> -> vector<16x16xf32>
    %c0_24 = arith.constant 0 : index
    %c0_25 = arith.constant 0 : index
    %49 = vector.load %arg9[%c0_24, %c0_25] : memref<16x16xf32, #tpu.memory_space<vmem>>, vector<16x16xf32>
    %50 = arith.mulf %48, %49 : vector<16x16xf32>
    %cst_26 = arith.constant dense<0.000000e+00> : vector<8x16xf32>
    %51 = tpu.matmul %45, %50, %cst_26 {dimension_numbers = #tpu.dot_dimension_numbers<[1], [0], [0], [1], [0, 0, 1, 1], [], []>} : vector<8x16xf32>, vector<16x16xf32>, vector<8x16xf32> -> vector<8x16xf32>
    %cst_27 = arith.constant 1.250000e-01 : f32
    %52 = vector.broadcast %cst_27 : f32 to vector<8x16xf32>
    %53 = arith.mulf %51, %52 : vector<8x16xf32>
    %54 = vector.extract_strided_slice %44 {offsets = [8, 0], sizes = [8, 16], strides = [1, 1]} : vector<16x48xf32> to vector<8x16xf32>
    %55 = vector.extract_strided_slice %44 {offsets = [8, 16], sizes = [8, 16], strides = [1, 1]} : vector<16x48xf32> to vector<8x16xf32>
    %56 = vector.extract_strided_slice %44 {offsets = [8, 32], sizes = [8, 16], strides = [1, 1]} : vector<16x48xf32> to vector<8x16xf32>
    %cst_28 = arith.constant dense<0.000000e+00> : vector<16x16xf32>
    %57 = tpu.matmul %55, %56, %cst_28 {dimension_numbers = #tpu.dot_dimension_numbers<[0], [0], [1], [1], [0, 1, 1, 1], [], []>} : vector<8x16xf32>, vector<8x16xf32>, vector<16x16xf32> -> vector<16x16xf32>
    %c0_29 = arith.constant 0 : index
    %c0_30 = arith.constant 0 : index
    %58 = vector.load %arg9[%c0_29, %c0_30] : memref<16x16xf32, #tpu.memory_space<vmem>>, vector<16x16xf32>
    %59 = arith.mulf %57, %58 : vector<16x16xf32>
    %cst_31 = arith.constant dense<0.000000e+00> : vector<8x16xf32>
    %60 = tpu.matmul %54, %59, %cst_31 {dimension_numbers = #tpu.dot_dimension_numbers<[1], [0], [0], [1], [0, 0, 1, 1], [], []>} : vector<8x16xf32>, vector<16x16xf32>, vector<8x16xf32> -> vector<8x16xf32>
    %cst_32 = arith.constant 1.250000e-01 : f32
    %61 = vector.broadcast %cst_32 : f32 to vector<8x16xf32>
    %62 = arith.mulf %60, %61 : vector<8x16xf32>
    %63 = tpu.concatenate %53, %62 in 0 : vector<8x16xf32>, vector<8x16xf32> -> vector<16x16xf32>
    %c0_33 = arith.constant 0 : index
    %c0_34 = arith.constant 0 : index
    %64 = vector.load %arg10[%c0_33, %c0_34] : memref<16x64xf32, #tpu.memory_space<vmem>>, vector<16x64xf32>
    %cst_35 = arith.constant dense<0.000000e+00> : vector<16x64xf32>
    %65 = tpu.matmul %63, %64, %cst_35 {dimension_numbers = #tpu.dot_dimension_numbers<[1], [0], [0], [1], [0, 0, 1, 1], [], []>} : vector<16x16xf32>, vector<16x64xf32>, vector<16x64xf32> -> vector<16x64xf32>
    %66 = arith.addf %0, %65 : vector<16x64xf32>
    %67 = arith.mulf %66, %66 : vector<16x64xf32>
    %cst_36 = arith.constant dense<0.000000e+00> : vector<16xf32>
    %68 = vector.multi_reduction <add>, %67, %cst_36 [1] : vector<16x64xf32> to vector<16xf32>
    %69 = vector.shape_cast %68 : vector<16xf32> to vector<16x1xf32>
    %cst_37 = arith.constant 6.400000e+01 : f32
    %70 = vector.broadcast %cst_37 : f32 to vector<16x1xf32>
    %71 = arith.divf %69, %70 : vector<16x1xf32>
    %cst_38 = arith.constant 9.99999974E-6 : f32
    %72 = vector.broadcast %cst_38 : f32 to vector<16x1xf32>
    %73 = arith.addf %71, %72 : vector<16x1xf32>
    %74 = math.rsqrt %73 : vector<16x1xf32>
    %75 = vector.broadcast %74 : vector<16x1xf32> to vector<16x64xf32>
    %76 = arith.mulf %66, %75 : vector<16x64xf32>
    %c0_39 = arith.constant 0 : index
    %c0_40 = arith.constant 0 : index
    %77 = vector.load %arg2[%c0_39, %c0_40] : memref<1x64xf32, #tpu.memory_space<vmem>>, vector<1x64xf32>
    %78 = vector.broadcast %77 : vector<1x64xf32> to vector<16x64xf32>
    %79 = arith.mulf %76, %78 : vector<16x64xf32>
    %c0_41 = arith.constant 0 : index
    %c0_42 = arith.constant 0 : index
    %80 = vector.load %arg11[%c0_41, %c0_42] : memref<64x4xf32, #tpu.memory_space<vmem>>, vector<64x4xf32>
    %cst_43 = arith.constant dense<0.000000e+00> : vector<16x4xf32>
    %81 = tpu.matmul %79, %80, %cst_43 {dimension_numbers = #tpu.dot_dimension_numbers<[1], [0], [0], [1], [0, 0, 1, 1], [], []>} : vector<16x64xf32>, vector<64x4xf32>, vector<16x4xf32> -> vector<16x4xf32>
    %cst_44 = arith.constant 0.000000e+00 : f32
    %82 = vector.broadcast %cst_44 : f32 to vector<16x4xf32>
    %83 = vector.extract_strided_slice %81 {offsets = [0, 0], sizes = [16, 1], strides = [1, 1]} : vector<16x4xf32> to vector<16x1xf32>
    %84 = vector.broadcast %83 : vector<16x1xf32> to vector<16x4xf32>
    %85 = arith.cmpf ogt, %84, %81 : vector<16x4xf32>
    %86 = arith.extui %85 : vector<16x4xi1> to vector<16x4xi32>
    %87 = arith.sitofp %86 : vector<16x4xi32> to vector<16x4xf32>
    %88 = arith.addf %82, %87 : vector<16x4xf32>
    %89 = vector.extract_strided_slice %81 {offsets = [0, 1], sizes = [16, 1], strides = [1, 1]} : vector<16x4xf32> to vector<16x1xf32>
    %90 = vector.broadcast %89 : vector<16x1xf32> to vector<16x4xf32>
    %91 = arith.cmpf ogt, %90, %81 : vector<16x4xf32>
    %92 = arith.extui %91 : vector<16x4xi1> to vector<16x4xi32>
    %93 = arith.sitofp %92 : vector<16x4xi32> to vector<16x4xf32>
    %94 = arith.addf %88, %93 : vector<16x4xf32>
    %95 = vector.extract_strided_slice %81 {offsets = [0, 2], sizes = [16, 1], strides = [1, 1]} : vector<16x4xf32> to vector<16x1xf32>
    %96 = vector.broadcast %95 : vector<16x1xf32> to vector<16x4xf32>
    %97 = arith.cmpf ogt, %96, %81 : vector<16x4xf32>
    %98 = arith.extui %97 : vector<16x4xi1> to vector<16x4xi32>
    %99 = arith.sitofp %98 : vector<16x4xi32> to vector<16x4xf32>
    %100 = arith.addf %94, %99 : vector<16x4xf32>
    %101 = vector.extract_strided_slice %81 {offsets = [0, 3], sizes = [16, 1], strides = [1, 1]} : vector<16x4xf32> to vector<16x1xf32>
    %102 = vector.broadcast %101 : vector<16x1xf32> to vector<16x4xf32>
    %103 = arith.cmpf ogt, %102, %81 : vector<16x4xf32>
    %104 = arith.extui %103 : vector<16x4xi1> to vector<16x4xi32>
    %105 = arith.sitofp %104 : vector<16x4xi32> to vector<16x4xf32>
    %106 = arith.addf %100, %105 : vector<16x4xf32>
    %cst_45 = arith.constant 2.000000e+00 : f32
    %107 = vector.broadcast %cst_45 : f32 to vector<16x4xf32>
    %108 = arith.cmpf olt, %106, %107 : vector<16x4xf32>
    %109 = arith.extui %108 : vector<16x4xi1> to vector<16x4xi32>
    %110 = arith.sitofp %109 : vector<16x4xi32> to vector<16x4xf32>
    %111 = arith.truncf %79 : vector<16x64xf32> to vector<16x64xbf16>
    %c0_46 = arith.constant 0 : index
    %c0_47 = arith.constant 0 : index
    %112 = vector.load %arg12[%c0_46, %c0_47] : memref<64x1024xbf16, #tpu.memory_space<vmem>>, vector<64x1024xbf16>
    %cst_48 = arith.constant dense<0.000000e+00> : vector<16x1024xf32>
    %113 = tpu.matmul %111, %112, %cst_48 {dimension_numbers = #tpu.dot_dimension_numbers<[1], [0], [0], [1], [0, 0, 1, 1], [], []>} : vector<16x64xbf16>, vector<64x1024xbf16>, vector<16x1024xf32> -> vector<16x1024xf32>
    %114 = vector.extract_strided_slice %113 {offsets = [0, 0], sizes = [16, 512], strides = [1, 1]} : vector<16x1024xf32> to vector<16x512xf32>
    %115 = vector.extract_strided_slice %113 {offsets = [0, 512], sizes = [16, 512], strides = [1, 1]} : vector<16x1024xf32> to vector<16x512xf32>
    %116 = arith.negf %114 : vector<16x512xf32>
    %117 = math.exp %116 : vector<16x512xf32>
    %cst_49 = arith.constant 1.000000e+00 : f32
    %118 = vector.broadcast %cst_49 : f32 to vector<16x512xf32>
    %119 = arith.addf %118, %117 : vector<16x512xf32>
    %120 = arith.divf %118, %119 : vector<16x512xf32>
    %121 = arith.mulf %114, %120 : vector<16x512xf32>
    %122 = arith.mulf %121, %115 : vector<16x512xf32>
    %c0_50 = arith.constant 0 : index
    %c0_51 = arith.constant 0 : index
    %123 = vector.load %arg13[%c0_50, %c0_51] : memref<4x512xf32, #tpu.memory_space<vmem>>, vector<4x512xf32>
    %cst_52 = arith.constant dense<0.000000e+00> : vector<16x512xf32>
    %124 = tpu.matmul %110, %123, %cst_52 {dimension_numbers = #tpu.dot_dimension_numbers<[1], [0], [0], [1], [0, 0, 1, 1], [], []>} : vector<16x4xf32>, vector<4x512xf32>, vector<16x512xf32> -> vector<16x512xf32>
    %125 = arith.mulf %122, %124 : vector<16x512xf32>
    %126 = arith.truncf %125 : vector<16x512xf32> to vector<16x512xbf16>
    %c0_53 = arith.constant 0 : index
    %c0_54 = arith.constant 0 : index
    %127 = vector.load %arg14[%c0_53, %c0_54] : memref<512x64xbf16, #tpu.memory_space<vmem>>, vector<512x64xbf16>
    %cst_55 = arith.constant dense<0.000000e+00> : vector<16x64xf32>
    %128 = tpu.matmul %126, %127, %cst_55 {dimension_numbers = #tpu.dot_dimension_numbers<[1], [0], [0], [1], [0, 0, 1, 1], [], []>} : vector<16x512xbf16>, vector<512x64xbf16>, vector<16x64xf32> -> vector<16x64xf32>
    %129 = arith.addf %66, %128 : vector<16x64xf32>
    %c0_56 = arith.constant 0 : index
    %c0_57 = arith.constant 0 : index
    %130 = vector.load %arg15[%c0_56, %c0_57] : memref<16x64xf32, #tpu.memory_space<vmem>>, vector<16x64xf32>
    tpu.vector_store %arg15[%c0_56, %c0_57], %129 {strides = array<i32>} : memref<16x64xf32, #tpu.memory_space<vmem>>, vector<16x64xf32>,
    return
  }
}

</mosaic_0001>

<llo_original>
// kernel: decoder_layer.1
$region0: #{decoder_layer.1}
  #allocation0 [shape = 'u32[]', space=smem, size = 0x4, offset = 0x4, fixed_abs, tag = 'smem constant byte address 0x4 - core index']
  #allocation1 [shape = 'u32[144,128]{1,0:T(1,128)}', space=vmem, size = 0x12000, scoped, tag = 'internal scratch']
  %s0 = inlined_call_operand.vmem [shape: f32[16,64], index: 0, kind: input, shape index: {}]
  %s1 = inlined_call_operand.vmem [shape: f32[1,64], index: 1, kind: input, shape index: {}]
  %s2 = inlined_call_operand.vmem [shape: f32[1,64], index: 2, kind: input, shape index: {}]
  %s3 = inlined_call_operand.vmem [shape: f32[64,256], index: 3, kind: input, shape index: {}]
  %s4 = inlined_call_operand.vmem [shape: f32[16,128], index: 4, kind: input, shape index: {}]
  %s5 = inlined_call_operand.hbm [shape: f32[16,128], index: 5, kind: input, shape index: {}]
  %s6 = inlined_call_operand.vmem [shape: f32[128,48], index: 6, kind: input, shape index: {}]
  %s7 = inlined_call_operand.vmem [shape: f32[48,48], index: 7, kind: input, shape index: {}]
  %s8 = inlined_call_operand.hbm [shape: f32[1,48], index: 8, kind: input, shape index: {}]
  %s9 = inlined_call_operand.hbm [shape: f32[16,16], index: 9, kind: input, shape index: {}]
  %s10 = inlined_call_operand.vmem [shape: f32[16,64], index: 10, kind: input, shape index: {}]
  %s11 = inlined_call_operand.vmem [shape: f32[64,4], index: 11, kind: input, shape index: {}]
  %s12 = inlined_call_operand.vmem [shape: bf16[64,1024], index: 12, kind: input, shape index: {}]
  %s13 = inlined_call_operand.hbm [shape: f32[4,512], index: 13, kind: input, shape index: {}]
  %s14 = inlined_call_operand.vmem [shape: bf16[512,64], index: 14, kind: input, shape index: {}]
  %s15 = inlined_call_operand.hbm [shape: f32[16,64], index: 15, kind: output, shape index: {}]
  %s16 = sld [smem:[#allocation0]]
  $region86: #{decoder_layer.1} parent=0
    _
  %s18 = ssub.s32 1, %s16
  %s19 = scalar_select 0, %s18, %s16
  $region1: #{decoder_layer.1} parent=0
    #allocation2 [shape = 'u8[8192]{0}', space=vmem, size = 0x2000, scoped, tag = 'input window, operand 5, single buffered']
    #allocation3 [shape = 's32[1]{0}', space=sflag, size = 0x4, scoped, tag = 'scoped memory for decoder_layer.1']
    #allocation4 [shape = 's32[1]{0}', space=sflag, size = 0x4, scoped, tag = 'scoped memory for decoder_layer.1']
    #allocation5 [shape = 'u8[512]{0}', space=vmem, size = 0x400, scoped, tag = 'input window, operand 8, single buffered']
    #allocation6 [shape = 's32[1]{0}', space=sflag, size = 0x4, scoped, tag = 'scoped memory for decoder_layer.1']
    #allocation7 [shape = 'u8[8192]{0}', space=vmem, size = 0x2000, scoped, tag = 'input window, operand 9, single buffered']
    #allocation8 [shape = 'u8[8192]{0}', space=vmem, size = 0x2000, scoped, tag = 'input window, operand 13, single buffered']
    #allocation9 [shape = 's32[1]{0}', space=sflag, size = 0x4, scoped, tag = 'scoped memory for decoder_layer.1']
    #allocation10 [shape = 'u8[8192]{0}', space=vmem, size = 0x2000, scoped, tag = 'output window, operand 0, single buffered']
    %20 = vsyncpa [#allocation3], 0
    %21 = vsyncpa [#allocation6], 0
    %22 = vsyncpa [#allocation9], 0
    %23 = vsyncpa [#allocation4], 0
    // Predicated region
    $region2: #{decoder_layer.1} parent=1 // pred_check
      _
    $region3: #{decoder_layer.1} parent=1 // pred_check_branch
      %25 = sbr.rel (0) target = $region5
    $region4: #{decoder_layer.1} parent=1 // pred_region
      _
    $region5: #{decoder_layer.1} parent=1 // pred_fallthru
      _
    // Predicated region
    $region6: #{decoder_layer.1} parent=1 // pred_check
      _
    $region7: #{decoder_layer.1} parent=1 // pred_check_branch
      %27 = sbr.rel (0) target = $region9
    $region8: #{decoder_layer.1} parent=1 // pred_region
      _
    $region9: #{decoder_layer.1} parent=1 // pred_fallthru
      _
    // Predicated region
    $region10: #{decoder_layer.1} parent=1 // pred_check
      _
    $region11: #{decoder_layer.1} parent=1 // pred_check_branch
      %29 = sbr.rel (0) target = $region13
    $region12: #{decoder_layer.1} parent=1 // pred_region
      _
    $region13: #{decoder_layer.1} parent=1 // pred_fallthru
      _
    // Predicated region
    $region14: #{decoder_layer.1} parent=1 // pred_check
      _
    $region15: #{decoder_layer.1} parent=1 // pred_check_branch
      %31 = sbr.rel (0) target = $region17
    $region16: #{decoder_layer.1} parent=1 // pred_region
      _
    $region17: #{decoder_layer.1} parent=1 // pred_fallthru
      _
    // Predicated region
    $region18: #{decoder_layer.1} parent=1 // pred_check
      _
    $region19: #{decoder_layer.1} parent=1 // pred_check_branch
      %33 = sbr.rel (0) target = $region21
    $region20: #{decoder_layer.1} parent=1 // pred_region
      _
    $region21: #{decoder_layer.1} parent=1 // pred_fallthru
      _
    // Predicated region
    $region22: #{decoder_layer.1} parent=1 // pred_check
      _
    $region23: #{decoder_layer.1} parent=1 // pred_check_branch
      %35 = sbr.rel (0) target = $region25
    $region24: #{decoder_layer.1} parent=1 // pred_region
      %s37 = ssub.s32 256, 256
      %38 = vsyncadd [#allocation3], %s37
      %s39 = sshll.u32 [#allocation2], 4
      %s40 = int_to_ptr.vmem [resolvable:$true] %s39
      %45 = dma.hbm_to_vmem [thread:$0]  %s5, 256, %s40, [#allocation3], 128, 128, 8
    $region25: #{decoder_layer.1} parent=1 // pred_fallthru
      _
    // Predicated region
    $region26: #{decoder_layer.1} parent=1 // pred_check
      _
    $region27: #{decoder_layer.1} parent=1 // pred_check_branch
      %47 = sbr.rel (0) target = $region29
    $region28: #{decoder_layer.1} parent=1 // pred_region
      _
    $region29: #{decoder_layer.1} parent=1 // pred_fallthru
      _
    // Predicated region
    $region30: #{decoder_layer.1} parent=1 // pred_check
      _
    $region31: #{decoder_layer.1} parent=1 // pred_check_branch
      %49 = sbr.rel (0) target = $region33
    $region32: #{decoder_layer.1} parent=1 // pred_region
      _
    $region33: #{decoder_layer.1} parent=1 // pred_fallthru
      _
    // Predicated region
    $region34: #{decoder_layer.1} parent=1 // pred_check
      _
    $region35: #{decoder_layer.1} parent=1 // pred_check_branch
      %51 = sbr.rel (0) target = $region37
    $region36: #{decoder_layer.1} parent=1 // pred_region
      %s53 = ssub.s32 16, 16
      %54 = vsyncadd [#allocation6], %s53
      %s56 = sshll.u32 [#allocation5], 4
      %s57 = int_to_ptr.vmem [resolvable:$true] %s56
      %59 = dma.hbm_to_vmem [thread:$0]  %s8, 16, %s57, [#allocation6]
    $region37: #{decoder_layer.1} parent=1 // pred_fallthru
      _
    // Predicated region
    $region38: #{decoder_layer.1} parent=1 // pred_check
      _
    $region39: #{decoder_layer.1} parent=1 // pred_check_branch
      %61 = sbr.rel (0) target = $region41
    $region40: #{decoder_layer.1} parent=1 // pred_region
      %s63 = ssub.s32 256, 256
      %64 = vsyncadd [#allocation6], %s63
      %s65 = sshll.u32 [#allocation7], 4
      %s66 = int_to_ptr.vmem [resolvable:$true] %s65
      %71 = dma.hbm_to_vmem [thread:$0]  %s9, 256, %s66, [#allocation6], 128, 128, 8
    $region41: #{decoder_layer.1} parent=1 // pred_fallthru
      _
    // Predicated region
    $region42: #{decoder_layer.1} parent=1 // pred_check
      _
    $region43: #{decoder_layer.1} parent=1 // pred_check_branch
      %73 = sbr.rel (0) target = $region45
    $region44: #{decoder_layer.1} parent=1 // pred_region
      _
    $region45: #{decoder_layer.1} parent=1 // pred_fallthru
      _
    // Predicated region
    $region46: #{decoder_layer.1} parent=1 // pred_check
      _
    $region47: #{decoder_layer.1} parent=1 // pred_check_branch
      %75 = sbr.rel (0) target = $region49
    $region48: #{decoder_layer.1} parent=1 // pred_region
      _
    $region49: #{decoder_layer.1} parent=1 // pred_fallthru
      _
    // Predicated region
    $region50: #{decoder_layer.1} parent=1 // pred_check
      _
    $region51: #{decoder_layer.1} parent=1 // pred_check_branch
      %77 = sbr.rel (0) target = $region53
    $region52: #{decoder_layer.1} parent=1 // pred_region
      _
    $region53: #{decoder_layer.1} parent=1 // pred_fallthru
      _
    // Predicated region
    $region54: #{decoder_layer.1} parent=1 // pred_check
      _
    $region55: #{decoder_layer.1} parent=1 // pred_check_branch
      %79 = sbr.rel (0) target = $region57
    $region56: #{decoder_layer.1} parent=1 // pred_region
      %s81 = ssub.s32 256, 256
      %82 = vsyncadd [#allocation9], %s81
      %s84 = sshll.u32 [#allocation8], 4
      %s85 = int_to_ptr.vmem [resolvable:$true] %s84
      %87 = dma.hbm_to_vmem [thread:$0]  %s13, 256, %s85, [#allocation9]
    $region57: #{decoder_layer.1} parent=1 // pred_fallthru
      _
    // Predicated region
    $region58: #{decoder_layer.1} parent=1 // pred_check
      _
    $region59: #{decoder_layer.1} parent=1 // pred_check_branch
      %89 = sbr.rel (0) target = $region61
    $region60: #{decoder_layer.1} parent=1 // pred_region
      _
    $region61: #{decoder_layer.1} parent=1 // pred_fallthru
      _
    // Predicated region
    $region62: #{decoder_layer.1} parent=1 // pred_check
      _
    $region63: #{decoder_layer.1} parent=1 // pred_check_branch
      %91 = sbr.rel (0) target = $region65
    $region64: #{decoder_layer.1} parent=1 // pred_region
      %92 = dma.done [#allocation3], 256
    $region65: #{decoder_layer.1} parent=1 // pred_fallthru
      _
    // Predicated region
    $region66: #{decoder_layer.1} parent=1 // pred_check
      _
    $region67: #{decoder_layer.1} parent=1 // pred_check_branch
      %94 = sbr.rel (0) target = $region69
    $region68: #{decoder_layer.1} parent=1 // pred_region
      %95 = dma.done [#allocation6], 16
    $region69: #{decoder_layer.1} parent=1 // pred_fallthru
      _
    // Predicated region
    $region70: #{decoder_layer.1} parent=1 // pred_check
      _
    $region71: #{decoder_layer.1} parent=1 // pred_check_branch
      %97 = sbr.rel (0) target = $region73
    $region72: #{decoder_layer.1} parent=1 // pred_region
      %98 = dma.done [#allocation6], 256
    $region73: #{decoder_layer.1} parent=1 // pred_fallthru
      _
    // Predicated region
    $region74: #{decoder_layer.1} parent=1 // pred_check
      _
    $region75: #{decoder_layer.1} parent=1 // pred_check_branch
      %100 = sbr.rel (0) target = $region77
    $region76: #{decoder_layer.1} parent=1 // pred_region
      %101 = dma.done [#allocation9], 256
    $region77: #{decoder_layer.1} parent=1 // pred_fallthru
      _
    %v103 = vld [vmem:[%s0] sm:$0xff]
    %v104 = vld [vmem:[%s0 + $0x8] sm:$0xff]
    %v105 = vmul.f32 %v103, %v103
    %v106 = vmul.f32 %v104, %v104
    %vm107 = vcmask 523264
    %v108 = vsel %vm107, %v105, 0.0
    %109 = vadd.xlane.f32.xlu0 %v108
    %v110 = vpop.xlane.xlu0 %109
    %v111 = vsel %vm107, %v106, 0.0
    %112 = vadd.xlane.f32.xlu0 %v111
    %v113 = vpop.xlane.xlu0 %112
    %v114 = vrcp.pop 64.0
    %v115 = vmul.f32 %v110, %v114
    %v116 = vmul.f32 %v113, %v114
    %v117 = vadd.f32 %v115, 1e-05
    %v118 = vadd.f32 %v116, 1e-05
    %v119 = vrsqrt.pop %v117
    %v120 = vrsqrt.pop %v118
    %v121 = vmul.f32 %v103, %v119
    %v122 = vmul.f32 %v104, %v120
    %v123 = vld [vmem:[%s1] sm:$0x1]
    %v125 = vlaneseq
    %v126 = vshrl.u32 %v125, 7
    %v127 = vsub.s32 0, %v126
    %v128 = vrot.slane %v123, %v127
    %v130 = vmul.f32 %v121, %v128
    %v131 = vmul.f32 %v122, %v128
    %v132 = vld [vmem:[%s3] sm:$0xff]
    %v133 = vld [vmem:[%s3 + $0x8] sm:$0xff]
    %v134 = vld [vmem:[%s3 + $0x10] sm:$0xff]
    %v135 = vld [vmem:[%s3 + $0x18] sm:$0xff]
    %v136 = vld [vmem:[%s3 + $0x20] sm:$0xff]
    %v137 = vld [vmem:[%s3 + $0x28] sm:$0xff]
    %v138 = vld [vmem:[%s3 + $0x30] sm:$0xff]
    %v139 = vld [vmem:[%s3 + $0x38] sm:$0xff]
    %v140 = vld [vmem:[%s3 + $0x40] sm:$0xff]
    %v141 = vld [vmem:[%s3 + $0x48] sm:$0xff]
    %v142 = vld [vmem:[%s3 + $0x50] sm:$0xff]
    %v143 = vld [vmem:[%s3 + $0x58] sm:$0xff]
    %v144 = vld [vmem:[%s3 + $0x60] sm:$0xff]
    %v145 = vld [vmem:[%s3 + $0x68] sm:$0xff]
    %v146 = vld [vmem:[%s3 + $0x70] sm:$0xff]
    %v147 = vld [vmem:[%s3 + $0x78] sm:$0xff]
    %v149 = vsel %vm107, %v130, 0
    %v152 = vsel %vm107, %v131, 0
    %154 = vmatprep.subr.mxu0 %v133
    %155 = vmatpush1.msra.mxu0 %v132
    %156 = vmatprep.subr.mxu0 %v135
    %157 = vmatpush1.msra.mxu0 %v134
    %158 = vmatprep.subr.mxu0 %v137
    %159 = vmatpush1.msra.mxu0 %v136
    %160 = vmatprep.subr.mxu0 %v139
    %161 = vmatpush1.msra.mxu0 %v138
    %162 = vmatprep.subr.mxu0 %v141
    %163 = vmatpush1.msra.mxu0 %v140
    %164 = vmatprep.subr.mxu0 %v143
    %165 = vmatpush1.msra.mxu0 %v142
    %166 = vmatprep.subr.mxu0 %v145
    %167 = vmatpush1.msra.mxu0 %v144
    %168 = vmatprep.subr.mxu0 %v147
    %169 = vmatpush1.msra.mxu0 %v146
    %170 = vmatprep.subr.mxu0 0.0
    %171 = vmatpush1.msra.mxu0 0.0
    %172 = vmatprep.subr.mxu0 0.0
    %173 = vmatpush1.msra.mxu0 0.0
    %174 = vmatprep.subr.mxu0 0.0
    %175 = vmatpush1.msra.mxu0 0.0
    %176 = vmatprep.subr.mxu0 0.0
    %177 = vmatpush1.msra.mxu0 0.0
    %178 = vmatprep.subr.mxu0 0.0
    %179 = vmatpush1.msra.mxu0 0.0
    %180 = vmatprep.subr.mxu0 0.0
    %181 = vmatpush1.msra.mxu0 0.0
    %182 = vmatprep.subr.mxu0 0.0
    %183 = vmatpush1.msra.mxu0 0.0
    %184 = vmatprep.subr.mxu0 0.0
    %185 = vmatpush1.msra.mxu0 0.0
    %186 = vmatprep.subr.mxu0 0.0
    %187 = vmatpush1.msra.mxu0 0.0
    %188 = vmatprep.subr.mxu0 0.0
    %189 = vmatpush1.msra.mxu0 0.0
    %190 = vmatprep.subr.mxu0 0.0
    %191 = vmatpush1.msra.mxu0 0.0
    %192 = vmatprep.subr.mxu0 0.0
    %193 = vmatpush1.msra.mxu0 0.0
    %194 = vmatprep.subr.mxu0 0.0
    %195 = vmatpush1.msra.mxu0 0.0
    %196 = vmatprep.subr.mxu0 0.0
    %197 = vmatpush1.msra.mxu0 0.0
    %198 = vmatprep.subr.mxu0 0.0
    %199 = vmatpush1.msra.mxu0 0.0
    %200 = vmatprep.subr.mxu0 0.0
    %201 = vmatpush1.msra.mxu0 0.0
    %202 = vmatprep.subr.mxu0 0.0
    %203 = vmatpush1.msra.mxu0 0.0
    %204 = vmatprep.subr.mxu0 0.0
    %205 = vmatpush1.msra.mxu0 0.0
    %206 = vmatprep.subr.mxu0 0.0
    %207 = vmatpush1.msra.mxu0 0.0
    %208 = vmatprep.subr.mxu0 0.0
    %209 = vmatpush1.msra.mxu0 0.0
    %210 = vmatprep.subr.mxu0 0.0
    %211 = vmatpush1.msra.mxu0 0.0
    %212 = vmatprep.subr.mxu0 0.0
    %213 = vmatpush1.msra.mxu0 0.0
    %214 = vmatprep.subr.mxu0 0.0
    %215 = vmatpush1.msra.mxu0 0.0
    %216 = vmatprep.subr.mxu0 0.0
    %217 = vmatpush1.msra.mxu0 0.0
    %218 = vmatprep.mubr.f32.mxu0 0.0
    %219 = vmatmul.mubr.f32.gmra.mrb[0].mxu0 %v149
    %v220 = vpop.f32.mrb[0].mxu0
    %v221 = vadd.f32 0.0, %v220
    %v222 = vpop.f32.mrb[0].mxu0
    %v223 = vadd.f32 0.0, %v222
    %224 = vmatprep.mubr.f32.mxu0 0.0
    %225 = vmatmul.mubr.f32.gmra.mrb[0].mxu0 %v152
    %v226 = vpop.f32.mrb[0].mxu0
    %v227 = vadd.f32 0.0, %v226
    %v228 = vpop.f32.mrb[0].mxu0
    %v229 = vadd.f32 0.0, %v228
    %230 = vdwg.mxu0
    %v231 = vld [vmem:[%s4] sm:$0xff]
    %v232 = vld [vmem:[%s4 + $0x8] sm:$0xff]
    %v233 = vmul.f32 %v221, %v231
    %v234 = vmul.f32 %v227, %v232
    %v235 = vld [vmem:[#allocation2] sm:$0xff]
    %v236 = vld [vmem:[#allocation2 + $0x8] sm:$0xff]
    %v237 = vmul.f32 %v223, %v235
    %v238 = vmul.f32 %v229, %v236
    %v239 = vadd.f32 %v233, %v237
    %v240 = vadd.f32 %v234, %v238
    %v241 = vld [vmem:[%s6] sm:$0xff]
    %v242 = vld [vmem:[%s6 + $0x8] sm:$0xff]
    %v243 = vld [vmem:[%s6 + $0x10] sm:$0xff]
    %v244 = vld [vmem:[%s6 + $0x18] sm:$0xff]
    %v245 = vld [vmem:[%s6 + $0x20] sm:$0xff]
    %v246 = vld [vmem:[%s6 + $0x28] sm:$0xff]
    %v247 = vld [vmem:[%s6 + $0x30] sm:$0xff]
    %v248 = vld [vmem:[%s6 + $0x38] sm:$0xff]
    %v249 = vld [vmem:[%s6 + $0x40] sm:$0xff]
    %v250 = vld [vmem:[%s6 + $0x48] sm:$0xff]
    %v251 = vld [vmem:[%s6 + $0x50] sm:$0xff]
    %v252 = vld [vmem:[%s6 + $0x58] sm:$0xff]
    %v253 = vld [vmem:[%s6 + $0x60] sm:$0xff]
    %v254 = vld [vmem:[%s6 + $0x68] sm:$0xff]
    %v255 = vld [vmem:[%s6 + $0x70] sm:$0xff]
    %v256 = vld [vmem:[%s6 + $0x78] sm:$0xff]
    %257 = vmatprep.subr.mxu0 0.0
    %258 = vmatpush1.msra.mxu0 %v241
    %259 = vmatprep.subr.mxu0 0.0
    %260 = vmatpush1.msra.mxu0 %v242
    %261 = vmatprep.subr.mxu0 0.0
    %262 = vmatpush1.msra.mxu0 %v243
    %263 = vmatprep.subr.mxu0 0.0
    %264 = vmatpush1.msra.mxu0 %v244
    %265 = vmatprep.subr.mxu0 0.0
    %266 = vmatpush1.msra.mxu0 %v245
    %267 = vmatprep.subr.mxu0 0.0
    %268 = vmatpush1.msra.mxu0 %v246
    %269 = vmatprep.subr.mxu0 0.0
    %270 = vmatpush1.msra.mxu0 %v247
    %271 = vmatprep.subr.mxu0 0.0
    %272 = vmatpush1.msra.mxu0 %v248
    %273 = vmatprep.subr.mxu0 0.0
    %274 = vmatpush1.msra.mxu0 %v249
    %275 = vmatprep.subr.mxu0 0.0
    %276 = vmatpush1.msra.mxu0 %v250
    %277 = vmatprep.subr.mxu0 0.0
    %278 = vmatpush1.msra.mxu0 %v251
    %279 = vmatprep.subr.mxu0 0.0
    %280 = vmatpush1.msra.mxu0 %v252
    %281 = vmatprep.subr.mxu0 0.0
    %282 = vmatpush1.msra.mxu0 %v253
    %283 = vmatprep.subr.mxu0 0.0
    %284 = vmatpush1.msra.mxu0 %v254
    %285 = vmatprep.subr.mxu0 0.0
    %286 = vmatpush1.msra.mxu0 %v255
    %287 = vmatprep.subr.mxu0 0.0
    %288 = vmatpush1.msra.mxu0 %v256
    %289 = vmatprep.subr.mxu0 0.0
    %290 = vmatpush1.msra.mxu0 0.0
    %291 = vmatprep.subr.mxu0 0.0
    %292 = vmatpush1.msra.mxu0 0.0
    %293 = vmatprep.subr.mxu0 0.0
    %294 = vmatpush1.msra.mxu0 0.0
    %295 = vmatprep.subr.mxu0 0.0
    %296 = vmatpush1.msra.mxu0 0.0
    %297 = vmatprep.subr.mxu0 0.0
    %298 = vmatpush1.msra.mxu0 0.0
    %299 = vmatprep.subr.mxu0 0.0
    %300 = vmatpush1.msra.mxu0 0.0
    %301 = vmatprep.subr.mxu0 0.0
    %302 = vmatpush1.msra.mxu0 0.0
    %303 = vmatprep.subr.mxu0 0.0
    %304 = vmatpush1.msra.mxu0 0.0
    %305 = vmatprep.subr.mxu0 0.0
    %306 = vmatpush1.msra.mxu0 0.0
    %307 = vmatprep.subr.mxu0 0.0
    %308 = vmatpush1.msra.mxu0 0.0
    %309 = vmatprep.subr.mxu0 0.0
    %310 = vmatpush1.msra.mxu0 0.0
    %311 = vmatprep.subr.mxu0 0.0
    %312 = vmatpush1.msra.mxu0 0.0
    %313 = vmatprep.subr.mxu0 0.0
    %314 = vmatpush1.msra.mxu0 0.0
    %315 = vmatprep.subr.mxu0 0.0
    %316 = vmatpush1.msra.mxu0 0.0
    %317 = vmatprep.subr.mxu0 0.0
    %318 = vmatpush1.msra.mxu0 0.0
    %319 = vmatprep.subr.mxu0 0.0
    %320 = vmatpush1.msra.mxu0 0.0
    %321 = vmatprep.mubr.f32.mxu0 0.0
    %322 = vmatmul.mubr.f32.gmra.mrb[0].mxu0 %v239
    %v323 = vpop.f32.mrb[0].mxu0
    %v324 = vadd.f32 0.0, %v323
    %v325 = vpop.f32.mrb[0].mxu0
    %326 = vmatprep.mubr.f32.mxu0 0.0
    %327 = vmatmul.mubr.f32.gmra.mrb[0].mxu0 %v240
    %v328 = vpop.f32.mrb[0].mxu0
    %v329 = vadd.f32 0.0, %v328
    %v330 = vpop.f32.mrb[0].mxu0
    %331 = vdwg.mxu0
    %v332 = vmul.f32 %v324, %v324
    %v333 = vmul.f32 %v329, %v329
    %v334 = vld [vmem:[%s7] sm:$0xff]
    %v335 = vld [vmem:[%s7 + $0x8] sm:$0xff]
    %v336 = vld [vmem:[%s7 + $0x10] sm:$0xff]
    %v337 = vld [vmem:[%s7 + $0x18] sm:$0xff]
    %v338 = vld [vmem:[%s7 + $0x20] sm:$0xff]
    %v339 = vld [vmem:[%s7 + $0x28] sm:$0xff]
    %vm340 = vcmask 392192
    %v342 = vsel %vm340, %v332, 0
    %v345 = vsel %vm340, %v333, 0
    %347 = vmatprep.subr.mxu0 0.0
    %348 = vmatpush1.msra.mxu0 %v334
    %349 = vmatprep.subr.mxu0 0.0
    %350 = vmatpush1.msra.mxu0 %v335
    %351 = vmatprep.subr.mxu0 0.0
    %352 = vmatpush1.msra.mxu0 %v336
    %353 = vmatprep.subr.mxu0 0.0
    %354 = vmatpush1.msra.mxu0 %v337
    %355 = vmatprep.subr.mxu0 0.0
    %356 = vmatpush1.msra.mxu0 %v338
    %357 = vmatprep.subr.mxu0 0.0
    %358 = vmatpush1.msra.mxu0 %v339
    %359 = vmatprep.subr.mxu0 0.0
    %360 = vmatpush1.msra.mxu0 0.0
    %361 = vmatprep.subr.mxu0 0.0
    %362 = vmatpush1.msra.mxu0 0.0
    %363 = vmatprep.subr.mxu0 0.0
    %364 = vmatpush1.msra.mxu0 0.0
    %365 = vmatprep.subr.mxu0 0.0
    %366 = vmatpush1.msra.mxu0 0.0
    %367 = vmatprep.subr.mxu0 0.0
    %368 = vmatpush1.msra.mxu0 0.0
    %369 = vmatprep.subr.mxu0 0.0
    %370 = vmatpush1.msra.mxu0 0.0
    %371 = vmatprep.subr.mxu0 0.0
    %372 = vmatpush1.msra.mxu0 0.0
    %373 = vmatprep.subr.mxu0 0.0
    %374 = vmatpush1.msra.mxu0 0.0
    %375 = vmatprep.subr.mxu0 0.0
    %376 = vmatpush1.msra.mxu0 0.0
    %377 = vmatprep.subr.mxu0 0.0
    %378 = vmatpush1.msra.mxu0 0.0
    %379 = vmatprep.subr.mxu0 0.0
    %380 = vmatpush1.msra.mxu0 0.0
    %381 = vmatprep.subr.mxu0 0.0
    %382 = vmatpush1.msra.mxu0 0.0
    %383 = vmatprep.subr.mxu0 0.0
    %384 = vmatpush1.msra.mxu0 0.0
    %385 = vmatprep.subr.mxu0 0.0
    %386 = vmatpush1.msra.mxu0 0.0
    %387 = vmatprep.subr.mxu0 0.0
    %388 = vmatpush1.msra.mxu0 0.0
    %389 = vmatprep.subr.mxu0 0.0
    %390 = vmatpush1.msra.mxu0 0.0
    %391 = vmatprep.subr.mxu0 0.0
    %392 = vmatpush1.msra.mxu0 0.0
    %393 = vmatprep.subr.mxu0 0.0
    %394 = vmatpush1.msra.mxu0 0.0
    %395 = vmatprep.subr.mxu0 0.0
    %396 = vmatpush1.msra.mxu0 0.0
    %397 = vmatprep.subr.mxu0 0.0
    %398 = vmatpush1.msra.mxu0 0.0
    %399 = vmatprep.subr.mxu0 0.0
    %400 = vmatpush1.msra.mxu0 0.0
    %401 = vmatprep.subr.mxu0 0.0
    %402 = vmatpush1.msra.mxu0 0.0
    %403 = vmatprep.subr.mxu0 0.0
    %404 = vmatpush1.msra.mxu0 0.0
    %405 = vmatprep.subr.mxu0 0.0
    %406 = vmatpush1.msra.mxu0 0.0
    %407 = vmatprep.subr.mxu0 0.0
    %408 = vmatpush1.msra.mxu0 0.0
    %409 = vmatprep.subr.mxu0 0.0
    %410 = vmatpush1.msra.mxu0 0.0
    %411 = vmatprep.mubr.f32.mxu0 0.0
    %412 = vmatmul.mubr.f32.gmra.mrb[0].mxu0 %v342
    %v413 = vpop.f32.mrb[0].mxu0
    %v414 = vadd.f32 1e-05, %v413
    %v415 = vpop.f32.mrb[0].mxu0
    %416 = vmatprep.mubr.f32.mxu0 0.0
    %417 = vmatmul.mubr.f32.gmra.mrb[0].mxu0 %v345
    %v418 = vpop.f32.mrb[0].mxu0
    %v419 = vadd.f32 1e-05, %v418
    %v420 = vpop.f32.mrb[0].mxu0
    %421 = vdwg.mxu0
    %v422 = vrsqrt.pop %v414
    %v423 = vrsqrt.pop %v419
    %v424 = vmul.f32 %v324, %v422
    %v425 = vmul.f32 %v329, %v423
    %v426 = vld [vmem:[#allocation5] sm:$0x1]
    %v428 = vlaneseq
    %v429 = vshrl.u32 %v428, 7
    %v430 = vsub.s32 0, %v429
    %v431 = vrot.slane %v426, %v430
    %v433 = vmul.f32 %v424, %v431
    %v434 = vmul.f32 %v425, %v431
    %v435 = vlaneseq
    %v436 = vand.u32 %v435, 127
    %vm437 = vcmp.gt.f32.partialorder %v433, 0.0
    %vm438 = vcmp.gt.f32.partialorder %v434, 0.0
    %v439 = vadd.f32 %v433, 1.0
    %v440 = vadd.f32 %v434, 1.0
    %v441 = vmul.f32 %v433, 1.442695
    %v442 = vpow.pop %v441
    %v443 = vmul.f32 %v434, 1.442695
    %v444 = vpow.pop %v443
    %v445 = vsel %vm437, %v439, %v442
    %v446 = vsel %vm438, %v440, %v444
    %vm447 = vcmp.lt.s32.totalorder %v436, 32
    %v448 = vsel %vm447, %v445, %v433
    %v449 = vsel %vm447, %v446, %v434
    %451 = vrot.lane.b32.xlu0 %v448, 112
    %v452 = vpop.permute.xlu0 %451
    %454 = vxpose.xlu0.b32.start [1/16] %v452, 128
    %455 = vxpose.xlu0.b32.cont [2/16] 0.0, 128
    %456 = vxpose.xlu0.b32.cont [3/16] 0.0, 128
    %457 = vxpose.xlu0.b32.cont [4/16] 0.0, 128
    %458 = vxpose.xlu0.b32.cont [5/16] 0.0, 128
    %459 = vxpose.xlu0.b32.cont [6/16] 0.0, 128
    %460 = vxpose.xlu0.b32.cont [7/16] 0.0, 128
    %461 = vxpose.xlu0.b32.cont [8/16] 0.0, 128
    %462 = vxpose.xlu0.b32.cont [9/16] 0.0, 128
    %463 = vxpose.xlu0.b32.cont [10/16] 0.0, 128
    %464 = vxpose.xlu0.b32.cont [11/16] 0.0, 128
    %465 = vxpose.xlu0.b32.cont [12/16] 0.0, 128
    %466 = vxpose.xlu0.b32.cont [13/16] 0.0, 128
    %467 = vxpose.xlu0.b32.cont [14/16] 0.0, 128
    %468 = vxpose.xlu0.b32.cont [15/16] 0.0, 128
    %469 = vxpose.xlu0.b32.end [16/16] 0.0, 128
    %v470 = vpop.trf.xlu0
    %v471 = vpop.trf.xlu0
    %v472 = vpop.trf.xlu0
    %v473 = vpop.trf.xlu0
    %v474 = vpop.trf.xlu0
    %v475 = vpop.trf.xlu0
    %v476 = vpop.trf.xlu0
    %v477 = vpop.trf.xlu0
    %v478 = vpop.trf.xlu0
    %v479 = vpop.trf.xlu0
    %v480 = vpop.trf.xlu0
    %v481 = vpop.trf.xlu0
    %v482 = vpop.trf.xlu0
    %v483 = vpop.trf.xlu0
    %v484 = vpop.trf.xlu0
    %v485 = vpop.trf.xlu0
    %486 = vrot.lane.b32.xlu0 %v448, 96
    %v487 = vpop.permute.xlu0 %486
    %vm489 = vcmask 64512
    %v491 = vsel %vm489, %v470, 0
    %v494 = vsel %vm489, %v471, 0
    %496 = vmatprep.subr.mxu0 0.0
    %497 = vmatpush1.msra.mxu0 %v487
    %498 = vmatprep.subr.mxu0 0.0
    %499 = vmatpush1.msra.mxu0 0.0
    %500 = vmatprep.subr.mxu0 0.0
    %501 = vmatpush1.msra.mxu0 0.0
    %502 = vmatprep.subr.mxu0 0.0
    %503 = vmatpush1.msra.mxu0 0.0
    %504 = vmatprep.subr.mxu0 0.0
    %505 = vmatpush1.msra.mxu0 0.0
    %506 = vmatprep.subr.mxu0 0.0
    %507 = vmatpush1.msra.mxu0 0.0
    %508 = vmatprep.subr.mxu0 0.0
    %509 = vmatpush1.msra.mxu0 0.0
    %510 = vmatprep.subr.mxu0 0.0
    %511 = vmatpush1.msra.mxu0 0.0
    %512 = vmatprep.subr.mxu0 0.0
    %513 = vmatpush1.msra.mxu0 0.0
    %514 = vmatprep.subr.mxu0 0.0
    %515 = vmatpush1.msra.mxu0 0.0
    %516 = vmatprep.subr.mxu0 0.0
    %517 = vmatpush1.msra.mxu0 0.0
    %518 = vmatprep.subr.mxu0 0.0
    %519 = vmatpush1.msra.mxu0 0.0
    %520 = vmatprep.subr.mxu0 0.0
    %521 = vmatpush1.msra.mxu0 0.0
    %522 = vmatprep.subr.mxu0 0.0
    %523 = vmatpush1.msra.mxu0 0.0
    %524 = vmatprep.subr.mxu0 0.0
    %525 = vmatpush1.msra.mxu0 0.0
    %526 = vmatprep.subr.mxu0 0.0
    %527 = vmatpush1.msra.mxu0 0.0
    %528 = vmatprep.subr.mxu0 0.0
    %529 = vmatpush1.msra.mxu0 0.0
    %530 = vmatprep.subr.mxu0 0.0
    %531 = vmatpush1.msra.mxu0 0.0
    %532 = vmatprep.subr.mxu0 0.0
    %533 = vmatpush1.msra.mxu0 0.0
    %534 = vmatprep.subr.mxu0 0.0
    %535 = vmatpush1.msra.mxu0 0.0
    %536 = vmatprep.subr.mxu0 0.0
    %537 = vmatpush1.msra.mxu0 0.0
    %538 = vmatprep.subr.mxu0 0.0
    %539 = vmatpush1.msra.mxu0 0.0
    %540 = vmatprep.subr.mxu0 0.0
    %541 = vmatpush1.msra.mxu0 0.0
    %542 = vmatprep.subr.mxu0 0.0
    %543 = vmatpush1.msra.mxu0 0.0
    %544 = vmatprep.subr.mxu0 0.0
    %545 = vmatpush1.msra.mxu0 0.0
    %546 = vmatprep.subr.mxu0 0.0
    %547 = vmatpush1.msra.mxu0 0.0
    %548 = vmatprep.subr.mxu0 0.0
    %549 = vmatpush1.msra.mxu0 0.0
    %550 = vmatprep.subr.mxu0 0.0
    %551 = vmatpush1.msra.mxu0 0.0
    %552 = vmatprep.subr.mxu0 0.0
    %553 = vmatpush1.msra.mxu0 0.0
    %554 = vmatprep.subr.mxu0 0.0
    %555 = vmatpush1.msra.mxu0 0.0
    %556 = vmatprep.subr.mxu0 0.0
    %557 = vmatpush1.msra.mxu0 0.0
    %558 = vmatprep.subr.mxu0 0.0
    %559 = vmatpush1.msra.mxu0 0.0
    %560 = vmatprep.mubr.f32.mxu0 0.0
    %561 = vmatmul.mubr.f32.gmra.mrb[0].mxu0 %v491
    %v562 = vpop.f32.mrb[0].mxu0
    %v563 = vadd.f32 0.0, %v562
    %v564 = vpop.f32.mrb[0].mxu0
    %565 = vmatprep.mubr.f32.mxu0 0.0
    %566 = vmatmul.mubr.f32.gmra.mrb[0].mxu0 %v494
    %v567 = vpop.f32.mrb[0].mxu0
    %v568 = vadd.f32 0.0, %v567
    %v569 = vpop.f32.mrb[0].mxu0
    %570 = vdwg.mxu0
    %v571 = vld [vmem:[#allocation7] sm:$0xff]
    %v572 = vld [vmem:[#allocation7 + $0x8] sm:$0xff]
    %v573 = vmul.f32 %v563, %v571
    %v574 = vmul.f32 %v568, %v572
    %vm575 = vcmask 130048
    %v576 = vsel %vm575, %v448, 0
    %578 = vmatprep.subr.mxu0 0.0
    %579 = vmatpush1.msra.mxu0 %v573
    %580 = vmatprep.subr.mxu0 0.0
    %581 = vmatpush1.msra.mxu0 %v574
    %582 = vmatprep.subr.mxu0 0.0
    %583 = vmatpush1.msra.mxu0 0.0
    %584 = vmatprep.subr.mxu0 0.0
    %585 = vmatpush1.msra.mxu0 0.0
    %586 = vmatprep.subr.mxu0 0.0
    %587 = vmatpush1.msra.mxu0 0.0
    %588 = vmatprep.subr.mxu0 0.0
    %589 = vmatpush1.msra.mxu0 0.0
    %590 = vmatprep.subr.mxu0 0.0
    %591 = vmatpush1.msra.mxu0 0.0
    %592 = vmatprep.subr.mxu0 0.0
    %593 = vmatpush1.msra.mxu0 0.0
    %594 = vmatprep.subr.mxu0 0.0
    %595 = vmatpush1.msra.mxu0 0.0
    %596 = vmatprep.subr.mxu0 0.0
    %597 = vmatpush1.msra.mxu0 0.0
    %598 = vmatprep.subr.mxu0 0.0
    %599 = vmatpush1.msra.mxu0 0.0
    %600 = vmatprep.subr.mxu0 0.0
    %601 = vmatpush1.msra.mxu0 0.0
    %602 = vmatprep.subr.mxu0 0.0
    %603 = vmatpush1.msra.mxu0 0.0
    %604 = vmatprep.subr.mxu0 0.0
    %605 = vmatpush1.msra.mxu0 0.0
    %606 = vmatprep.subr.mxu0 0.0
    %607 = vmatpush1.msra.mxu0 0.0
    %608 = vmatprep.subr.mxu0 0.0
    %609 = vmatpush1.msra.mxu0 0.0
    %610 = vmatprep.subr.mxu0 0.0
    %611 = vmatpush1.msra.mxu0 0.0
    %612 = vmatprep.subr.mxu0 0.0
    %613 = vmatpush1.msra.mxu0 0.0
    %614 = vmatprep.subr.mxu0 0.0
    %615 = vmatpush1.msra.mxu0 0.0
    %616 = vmatprep.subr.mxu0 0.0
    %617 = vmatpush1.msra.mxu0 0.0
    %618 = vmatprep.subr.mxu0 0.0
    %619 = vmatpush1.msra.mxu0 0.0
    %620 = vmatprep.subr.mxu0 0.0
    %621 = vmatpush1.msra.mxu0 0.0
    %622 = vmatprep.subr.mxu0 0.0
    %623 = vmatpush1.msra.mxu0 0.0
    %624 = vmatprep.subr.mxu0 0.0
    %625 = vmatpush1.msra.mxu0 0.0
    %626 = vmatprep.subr.mxu0 0.0
    %627 = vmatpush1.msra.mxu0 0.0
    %628 = vmatprep.subr.mxu0 0.0
    %629 = vmatpush1.msra.mxu0 0.0
    %630 = vmatprep.subr.mxu0 0.0
    %631 = vmatpush1.msra.mxu0 0.0
    %632 = vmatprep.subr.mxu0 0.0
    %633 = vmatpush1.msra.mxu0 0.0
    %634 = vmatprep.subr.mxu0 0.0
    %635 = vmatpush1.msra.mxu0 0.0
    %636 = vmatprep.subr.mxu0 0.0
    %637 = vmatpush1.msra.mxu0 0.0
    %638 = vmatprep.subr.mxu0 0.0
    %639 = vmatpush1.msra.mxu0 0.0
    %640 = vmatprep.subr.mxu0 0.0
    %641 = vmatpush1.msra.mxu0 0.0
    %642 = vmatprep.mubr.f32.mxu0 0.0
    %643 = vmatmul.mubr.f32.gmra.mrb[0].mxu0 %v576
    %v644 = vpop.f32.mrb[0].mxu0
    %v645 = vadd.f32 0.0, %v644
    %v646 = vpop.f32.mrb[0].mxu0
    %647 = vdwg.mxu0
    %v648 = vmul.f32 %v645, 0.125
    %650 = vrot.lane.b32.xlu0 %v449, 112
    %v651 = vpop.permute.xlu0 %650
    %653 = vxpose.xlu0.b32.start [1/16] %v651, 128
    %654 = vxpose.xlu0.b32.cont [2/16] 0.0, 128
    %655 = vxpose.xlu0.b32.cont [3/16] 0.0, 128
    %656 = vxpose.xlu0.b32.cont [4/16] 0.0, 128
    %657 = vxpose.xlu0.b32.cont [5/16] 0.0, 128
    %658 = vxpose.xlu0.b32.cont [6/16] 0.0, 128
    %659 = vxpose.xlu0.b32.cont [7/16] 0.0, 128
    %660 = vxpose.xlu0.b32.cont [8/16] 0.0, 128
    %661 = vxpose.xlu0.b32.cont [9/16] 0.0, 128
    %662 = vxpose.xlu0.b32.cont [10/16] 0.0, 128
    %663 = vxpose.xlu0.b32.cont [11/16] 0.0, 128
    %664 = vxpose.xlu0.b32.cont [12/16] 0.0, 128
    %665 = vxpose.xlu0.b32.cont [13/16] 0.0, 128
    %666 = vxpose.xlu0.b32.cont [14/16] 0.0, 128
    %667 = vxpose.xlu0.b32.cont [15/16] 0.0, 128
    %668 = vxpose.xlu0.b32.end [16/16] 0.0, 128
    %v669 = vpop.trf.xlu0
    %v670 = vpop.trf.xlu0
    %v671 = vpop.trf.xlu0
    %v672 = vpop.trf.xlu0
    %v673 = vpop.trf.xlu0
    %v674 = vpop.trf.xlu0
    %v675 = vpop.trf.xlu0
    %v676 = vpop.trf.xlu0
    %v677 = vpop.trf.xlu0
    %v678 = vpop.trf.xlu0
    %v679 = vpop.trf.xlu0
    %v680 = vpop.trf.xlu0
    %v681 = vpop.trf.xlu0
    %v682 = vpop.trf.xlu0
    %v683 = vpop.trf.xlu0
    %v684 = vpop.trf.xlu0
    %685 = vrot.lane.b32.xlu0 %v449, 96
    %v686 = vpop.permute.xlu0 %685
    %v689 = vsel %vm489, %v669, 0
    %v692 = vsel %vm489, %v670, 0
    %694 = vmatprep.subr.mxu0 0.0
    %695 = vmatpush1.msra.mxu0 %v686
    %696 = vmatprep.subr.mxu0 0.0
    %697 = vmatpush1.msra.mxu0 0.0
    %698 = vmatprep.subr.mxu0 0.0
    %699 = vmatpush1.msra.mxu0 0.0
    %700 = vmatprep.subr.mxu0 0.0
    %701 = vmatpush1.msra.mxu0 0.0
    %702 = vmatprep.subr.mxu0 0.0
    %703 = vmatpush1.msra.mxu0 0.0
    %704 = vmatprep.subr.mxu0 0.0
    %705 = vmatpush1.msra.mxu0 0.0
    %706 = vmatprep.subr.mxu0 0.0
    %707 = vmatpush1.msra.mxu0 0.0
    %708 = vmatprep.subr.mxu0 0.0
    %709 = vmatpush1.msra.mxu0 0.0
    %710 = vmatprep.subr.mxu0 0.0
    %711 = vmatpush1.msra.mxu0 0.0
    %712 = vmatprep.subr.mxu0 0.0
    %713 = vmatpush1.msra.mxu0 0.0
    %714 = vmatprep.subr.mxu0 0.0
    %715 = vmatpush1.msra.mxu0 0.0
    %716 = vmatprep.subr.mxu0 0.0
    %717 = vmatpush1.msra.mxu0 0.0
    %718 = vmatprep.subr.mxu0 0.0
    %719 = vmatpush1.msra.mxu0 0.0
    %720 = vmatprep.subr.mxu0 0.0
    %721 = vmatpush1.msra.mxu0 0.0
    %722 = vmatprep.subr.mxu0 0.0
    %723 = vmatpush1.msra.mxu0 0.0
    %724 = vmatprep.subr.mxu0 0.0
    %725 = vmatpush1.msra.mxu0 0.0
    %726 = vmatprep.subr.mxu0 0.0
    %727 = vmatpush1.msra.mxu0 0.0
    %728 = vmatprep.subr.mxu0 0.0
    %729 = vmatpush1.msra.mxu0 0.0
    %730 = vmatprep.subr.mxu0 0.0
    %731 = vmatpush1.msra.mxu0 0.0
    %732 = vmatprep.subr.mxu0 0.0
    %733 = vmatpush1.msra.mxu0 0.0
    %734 = vmatprep.subr.mxu0 0.0
    %735 = vmatpush1.msra.mxu0 0.0
    %736 = vmatprep.subr.mxu0 0.0
    %737 = vmatpush1.msra.mxu0 0.0
    %738 = vmatprep.subr.mxu0 0.0
    %739 = vmatpush1.msra.mxu0 0.0
    %740 = vmatprep.subr.mxu0 0.0
    %741 = vmatpush1.msra.mxu0 0.0
    %742 = vmatprep.subr.mxu0 0.0
    %743 = vmatpush1.msra.mxu0 0.0
    %744 = vmatprep.subr.mxu0 0.0
    %745 = vmatpush1.msra.mxu0 0.0
    %746 = vmatprep.subr.mxu0 0.0
    %747 = vmatpush1.msra.mxu0 0.0
    %748 = vmatprep.subr.mxu0 0.0
    %749 = vmatpush1.msra.mxu0 0.0
    %750 = vmatprep.subr.mxu0 0.0
    %751 = vmatpush1.msra.mxu0 0.0
    %752 = vmatprep.subr.mxu0 0.0
    %753 = vmatpush1.msra.mxu0 0.0
    %754 = vmatprep.subr.mxu0 0.0
    %755 = vmatpush1.msra.mxu0 0.0
    %756 = vmatprep.subr.mxu0 0.0
    %757 = vmatpush1.msra.mxu0 0.0
    %758 = vmatprep.mubr.f32.mxu0 0.0
    %759 = vmatmul.mubr.f32.gmra.mrb[0].mxu0 %v689
    %v760 = vpop.f32.mrb[0].mxu0
    %v761 = vadd.f32 0.0, %v760
    %v762 = vpop.f32.mrb[0].mxu0
    %763 = vmatprep.mubr.f32.mxu0 0.0
    %764 = vmatmul.mubr.f32.gmra.mrb[0].mxu0 %v692
    %v765 = vpop.f32.mrb[0].mxu0
    %v766 = vadd.f32 0.0, %v765
    %v767 = vpop.f32.mrb[0].mxu0
    %768 = vdwg.mxu0
    %v769 = vmul.f32 %v761, %v571
    %v770 = vmul.f32 %v766, %v572
    %v771 = vsel %vm575, %v449, 0
    %773 = vmatprep.subr.mxu0 0.0
    %774 = vmatpush1.msra.mxu0 %v769
    %775 = vmatprep.subr.mxu0 0.0
    %776 = vmatpush1.msra.mxu0 %v770
    %777 = vmatprep.subr.mxu0 0.0
    %778 = vmatpush1.msra.mxu0 0.0
    %779 = vmatprep.subr.mxu0 0.0
    %780 = vmatpush1.msra.mxu0 0.0
    %781 = vmatprep.subr.mxu0 0.0
    %782 = vmatpush1.msra.mxu0 0.0
    %783 = vmatprep.subr.mxu0 0.0
    %784 = vmatpush1.msra.mxu0 0.0
    %785 = vmatprep.subr.mxu0 0.0
    %786 = vmatpush1.msra.mxu0 0.0
    %787 = vmatprep.subr.mxu0 0.0
    %788 = vmatpush1.msra.mxu0 0.0
    %789 = vmatprep.subr.mxu0 0.0
    %790 = vmatpush1.msra.mxu0 0.0
    %791 = vmatprep.subr.mxu0 0.0
    %792 = vmatpush1.msra.mxu0 0.0
    %793 = vmatprep.subr.mxu0 0.0
    %794 = vmatpush1.msra.mxu0 0.0
    %795 = vmatprep.subr.mxu0 0.0
    %796 = vmatpush1.msra.mxu0 0.0
    %797 = vmatprep.subr.mxu0 0.0
    %798 = vmatpush1.msra.mxu0 0.0
    %799 = vmatprep.subr.mxu0 0.0
    %800 = vmatpush1.msra.mxu0 0.0
    %801 = vmatprep.subr.mxu0 0.0
    %802 = vmatpush1.msra.mxu0 0.0
    %803 = vmatprep.subr.mxu0 0.0
    %804 = vmatpush1.msra.mxu0 0.0
    %805 = vmatprep.subr.mxu0 0.0
    %806 = vmatpush1.msra.mxu0 0.0
    %807 = vmatprep.subr.mxu0 0.0
    %808 = vmatpush1.msra.mxu0 0.0
    %809 = vmatprep.subr.mxu0 0.0
    %810 = vmatpush1.msra.mxu0 0.0
    %811 = vmatprep.subr.mxu0 0.0
    %812 = vmatpush1.msra.mxu0 0.0
    %813 = vmatprep.subr.mxu0 0.0
    %814 = vmatpush1.msra.mxu0 0.0
    %815 = vmatprep.subr.mxu0 0.0
    %816 = vmatpush1.msra.mxu0 0.0
    %817 = vmatprep.subr.mxu0 0.0
    %818 = vmatpush1.msra.mxu0 0.0
    %819 = vmatprep.subr.mxu0 0.0
    %820 = vmatpush1.msra.mxu0 0.0
    %821 = vmatprep.subr.mxu0 0.0
    %822 = vmatpush1.msra.mxu0 0.0
    %823 = vmatprep.subr.mxu0 0.0
    %824 = vmatpush1.msra.mxu0 0.0
    %825 = vmatprep.subr.mxu0 0.0
    %826 = vmatpush1.msra.mxu0 0.0
    %827 = vmatprep.subr.mxu0 0.0
    %828 = vmatpush1.msra.mxu0 0.0
    %829 = vmatprep.subr.mxu0 0.0
    %830 = vmatpush1.msra.mxu0 0.0
    %831 = vmatprep.subr.mxu0 0.0
    %832 = vmatpush1.msra.mxu0 0.0
    %833 = vmatprep.subr.mxu0 0.0
    %834 = vmatpush1.msra.mxu0 0.0
    %835 = vmatprep.subr.mxu0 0.0
    %836 = vmatpush1.msra.mxu0 0.0
    %837 = vmatprep.mubr.f32.mxu0 0.0
    %838 = vmatmul.mubr.f32.gmra.mrb[0].mxu0 %v771
    %v839 = vpop.f32.mrb[0].mxu0
    %v840 = vadd.f32 0.0, %v839
    %v841 = vpop.f32.mrb[0].mxu0
    %842 = vdwg.mxu0
    %v843 = vmul.f32 %v840, 0.125
    %v844 = vld [vmem:[%s10] sm:$0xff]
    %v845 = vld [vmem:[%s10 + $0x8] sm:$0xff]
    %v847 = vsel %vm575, %v648, 0
    %v850 = vsel %vm575, %v843, 0
    %852 = vmatprep.subr.mxu0 0.0
    %853 = vmatpush1.msra.mxu0 %v844
    %854 = vmatprep.subr.mxu0 0.0
    %855 = vmatpush1.msra.mxu0 %v845
    %856 = vmatprep.subr.mxu0 0.0
    %857 = vmatpush1.msra.mxu0 0.0
    %858 = vmatprep.subr.mxu0 0.0
    %859 = vmatpush1.msra.mxu0 0.0
    %860 = vmatprep.subr.mxu0 0.0
    %861 = vmatpush1.msra.mxu0 0.0
    %862 = vmatprep.subr.mxu0 0.0
    %863 = vmatpush1.msra.mxu0 0.0
    %864 = vmatprep.subr.mxu0 0.0
    %865 = vmatpush1.msra.mxu0 0.0
    %866 = vmatprep.subr.mxu0 0.0
    %867 = vmatpush1.msra.mxu0 0.0
    %868 = vmatprep.subr.mxu0 0.0
    %869 = vmatpush1.msra.mxu0 0.0
    %870 = vmatprep.subr.mxu0 0.0
    %871 = vmatpush1.msra.mxu0 0.0
    %872 = vmatprep.subr.mxu0 0.0
    %873 = vmatpush1.msra.mxu0 0.0
    %874 = vmatprep.subr.mxu0 0.0
    %875 = vmatpush1.msra.mxu0 0.0
    %876 = vmatprep.subr.mxu0 0.0
    %877 = vmatpush1.msra.mxu0 0.0
    %878 = vmatprep.subr.mxu0 0.0
    %879 = vmatpush1.msra.mxu0 0.0
    %880 = vmatprep.subr.mxu0 0.0
    %881 = vmatpush1.msra.mxu0 0.0
    %882 = vmatprep.subr.mxu0 0.0
    %883 = vmatpush1.msra.mxu0 0.0
    %884 = vmatprep.subr.mxu0 0.0
    %885 = vmatpush1.msra.mxu0 0.0
    %886 = vmatprep.subr.mxu0 0.0
    %887 = vmatpush1.msra.mxu0 0.0
    %888 = vmatprep.subr.mxu0 0.0
    %889 = vmatpush1.msra.mxu0 0.0
    %890 = vmatprep.subr.mxu0 0.0
    %891 = vmatpush1.msra.mxu0 0.0
    %892 = vmatprep.subr.mxu0 0.0
    %893 = vmatpush1.msra.mxu0 0.0
    %894 = vmatprep.subr.mxu0 0.0
    %895 = vmatpush1.msra.mxu0 0.0
    %896 = vmatprep.subr.mxu0 0.0
    %897 = vmatpush1.msra.mxu0 0.0
    %898 = vmatprep.subr.mxu0 0.0
    %899 = vmatpush1.msra.mxu0 0.0
    %900 = vmatprep.subr.mxu0 0.0
    %901 = vmatpush1.msra.mxu0 0.0
    %902 = vmatprep.subr.mxu0 0.0
    %903 = vmatpush1.msra.mxu0 0.0
    %904 = vmatprep.subr.mxu0 0.0
    %905 = vmatpush1.msra.mxu0 0.0
    %906 = vmatprep.subr.mxu0 0.0
    %907 = vmatpush1.msra.mxu0 0.0
    %908 = vmatprep.subr.mxu0 0.0
    %909 = vmatpush1.msra.mxu0 0.0
    %910 = vmatprep.subr.mxu0 0.0
    %911 = vmatpush1.msra.mxu0 0.0
    %912 = vmatprep.subr.mxu0 0.0
    %913 = vmatpush1.msra.mxu0 0.0
    %914 = vmatprep.subr.mxu0 0.0
    %915 = vmatpush1.msra.mxu0 0.0
    %916 = vmatprep.mubr.f32.mxu0 0.0
    %917 = vmatmul.mubr.f32.gmra.mrb[0].mxu0 %v847
    %v918 = vpop.f32.mrb[0].mxu0
    %v919 = vadd.f32 0.0, %v918
    %v920 = vpop.f32.mrb[0].mxu0
    %921 = vmatprep.mubr.f32.mxu0 0.0
    %922 = vmatmul.mubr.f32.gmra.mrb[0].mxu0 %v850
    %v923 = vpop.f32.mrb[0].mxu0
    %v924 = vadd.f32 0.0, %v923
    %v925 = vpop.f32.mrb[0].mxu0
    %926 = vdwg.mxu0
    %v927 = vadd.f32 %v103, %v919
    %v928 = vadd.f32 %v104, %v924
    %v929 = vmul.f32 %v927, %v927
    %v930 = vmul.f32 %v928, %v928
    %v931 = vsel %vm107, %v929, 0.0
    %932 = vadd.xlane.f32.xlu0 %v931
    %v933 = vpop.xlane.xlu0 %932
    %v934 = vsel %vm107, %v930, 0.0
    %935 = vadd.xlane.f32.xlu0 %v934
    %v936 = vpop.xlane.xlu0 %935
    %v937 = vmul.f32 %v933, %v114
    %v938 = vmul.f32 %v936, %v114
    %v939 = vadd.f32 %v937, 1e-05
    %v940 = vadd.f32 %v938, 1e-05
    %v941 = vrsqrt.pop %v939
    %v942 = vrsqrt.pop %v940
    %v943 = vmul.f32 %v927, %v941
    %v944 = vmul.f32 %v928, %v942
    %v945 = vld [vmem:[%s2] sm:$0x1]
    %v947 = vlaneseq
    %v948 = vshrl.u32 %v947, 7
    %v949 = vsub.s32 0, %v948
    %v950 = vrot.slane %v945, %v949
    %v952 = vmul.f32 %v943, %v950
    %v953 = vmul.f32 %v944, %v950
    %v954 = vld [vmem:[%s11] sm:$0xff]
    %v955 = vld [vmem:[%s11 + $0x8] sm:$0xff]
    %v956 = vld [vmem:[%s11 + $0x10] sm:$0xff]
    %v957 = vld [vmem:[%s11 + $0x18] sm:$0xff]
    %v958 = vld [vmem:[%s11 + $0x20] sm:$0xff]
    %v959 = vld [vmem:[%s11 + $0x28] sm:$0xff]
    %v960 = vld [vmem:[%s11 + $0x30] sm:$0xff]
    %v961 = vld [vmem:[%s11 + $0x38] sm:$0xff]
    %v963 = vsel %vm107, %v952, 0
    %v966 = vsel %vm107, %v953, 0
    %968 = vmatprep.subr.mxu0 0.0
    %969 = vmatpush1.msra.mxu0 %v954
    %970 = vmatprep.subr.mxu0 0.0
    %971 = vmatpush1.msra.mxu0 %v955
    %972 = vmatprep.subr.mxu0 0.0
    %973 = vmatpush1.msra.mxu0 %v956
    %974 = vmatprep.subr.mxu0 0.0
    %975 = vmatpush1.msra.mxu0 %v957
    %976 = vmatprep.subr.mxu0 0.0
    %977 = vmatpush1.msra.mxu0 %v958
    %978 = vmatprep.subr.mxu0 0.0
    %979 = vmatpush1.msra.mxu0 %v959
    %980 = vmatprep.subr.mxu0 0.0
    %981 = vmatpush1.msra.mxu0 %v960
    %982 = vmatprep.subr.mxu0 0.0
    %983 = vmatpush1.msra.mxu0 %v961
    %984 = vmatprep.subr.mxu0 0.0
    %985 = vmatpush1.msra.mxu0 0.0
    %986 = vmatprep.subr.mxu0 0.0
    %987 = vmatpush1.msra.mxu0 0.0
    %988 = vmatprep.subr.mxu0 0.0
    %989 = vmatpush1.msra.mxu0 0.0
    %990 = vmatprep.subr.mxu0 0.0
    %991 = vmatpush1.msra.mxu0 0.0
    %992 = vmatprep.subr.mxu0 0.0
    %993 = vmatpush1.msra.mxu0 0.0
    %994 = vmatprep.subr.mxu0 0.0
    %995 = vmatpush1.msra.mxu0 0.0
    %996 = vmatprep.subr.mxu0 0.0
    %997 = vmatpush1.msra.mxu0 0.0
    %998 = vmatprep.subr.mxu0 0.0
    %999 = vmatpush1.msra.mxu0 0.0
    %1000 = vmatprep.subr.mxu0 0.0
    %1001 = vmatpush1.msra.mxu0 0.0
    %1002 = vmatprep.subr.mxu0 0.0
    %1003 = vmatpush1.msra.mxu0 0.0
    %1004 = vmatprep.subr.mxu0 0.0
    %1005 = vmatpush1.msra.mxu0 0.0
    %1006 = vmatprep.subr.mxu0 0.0
    %1007 = vmatpush1.msra.mxu0 0.0
    %1008 = vmatprep.subr.mxu0 0.0
    %1009 = vmatpush1.msra.mxu0 0.0
    %1010 = vmatprep.subr.mxu0 0.0
    %1011 = vmatpush1.msra.mxu0 0.0
    %1012 = vmatprep.subr.mxu0 0.0
    %1013 = vmatpush1.msra.mxu0 0.0
    %1014 = vmatprep.subr.mxu0 0.0
    %1015 = vmatpush1.msra.mxu0 0.0
    %1016 = vmatprep.subr.mxu0 0.0
    %1017 = vmatpush1.msra.mxu0 0.0
    %1018 = vmatprep.subr.mxu0 0.0
    %1019 = vmatpush1.msra.mxu0 0.0
    %1020 = vmatprep.subr.mxu0 0.0
    %1021 = vmatpush1.msra.mxu0 0.0
    %1022 = vmatprep.subr.mxu0 0.0
    %1023 = vmatpush1.msra.mxu0 0.0
    %1024 = vmatprep.subr.mxu0 0.0
    %1025 = vmatpush1.msra.mxu0 0.0
    %1026 = vmatprep.subr.mxu0 0.0
    %1027 = vmatpush1.msra.mxu0 0.0
    %1028 = vmatprep.subr.mxu0 0.0
    %1029 = vmatpush1.msra.mxu0 0.0
    %1030 = vmatprep.subr.mxu0 0.0
    %1031 = vmatpush1.msra.mxu0 0.0
    %1032 = vmatprep.mubr.f32.mxu0 0.0
    %1033 = vmatmul.mubr.f32.gmra.mrb[0].mxu0 %v963
    %v1034 = vpop.f32.mrb[0].mxu0
    %v1035 = vadd.f32 0.0, %v1034
    %v1036 = vpop.f32.mrb[0].mxu0
    %1037 = vmatprep.mubr.f32.mxu0 0.0
    %1038 = vmatmul.mubr.f32.gmra.mrb[0].mxu0 %v966
    %v1039 = vpop.f32.mrb[0].mxu0
    %v1040 = vadd.f32 0.0, %v1039
    %v1041 = vpop.f32.mrb[0].mxu0
    %1042 = vdwg.mxu0
    %1044 = vset.pattern.permute.xlu0 0
    %1045 = vperm.xlu0 %1044, %v1035
    %v1046 = vpop.permute.xlu0 %1045
    %1049 = vset.pattern.permute.xlu0 0
    %1050 = vperm.xlu0 %1049, %v1040
    %v1051 = vpop.permute.xlu0 %1050
    %vm1053 = vcmp.gt.f32.partialorder %v1046, %v1035
    %vm1054 = vcmp.gt.f32.partialorder %v1051, %v1040
    %v1055 = vsel %vm1053, 1, 0
    %v1056 = vsel %vm1054, 1, 0
    %v1057 = vcvt.s32.f32 %v1055
    %v1058 = vcvt.s32.f32 %v1056
    %v1059 = vadd.f32 %v1057, 0.0
    %v1060 = vadd.f32 %v1058, 0.0
    %1061 = vset.pattern.permute.xlu0 1
    %1062 = vperm.xlu0 %1061, %v1035
    %v1063 = vpop.permute.xlu0 %1062
    %1065 = vset.pattern.permute.xlu0 1
    %1066 = vperm.xlu0 %1065, %v1040
    %v1067 = vpop.permute.xlu0 %1066
    %vm1069 = vcmp.gt.f32.partialorder %v1063, %v1035
    %vm1070 = vcmp.gt.f32.partialorder %v1067, %v1040
    %v1071 = vsel %vm1069, 1, 0
    %v1072 = vsel %vm1070, 1, 0
    %v1073 = vcvt.s32.f32 %v1071
    %v1074 = vcvt.s32.f32 %v1072
    %v1075 = vadd.f32 %v1059, %v1073
    %v1076 = vadd.f32 %v1060, %v1074
    %1077 = vset.pattern.permute.xlu0 2
    %1078 = vperm.xlu0 %1077, %v1035
    %v1079 = vpop.permute.xlu0 %1078
    %1081 = vset.pattern.permute.xlu0 2
    %1082 = vperm.xlu0 %1081, %v1040
    %v1083 = vpop.permute.xlu0 %1082
    %vm1085 = vcmp.gt.f32.partialorder %v1079, %v1035
    %vm1086 = vcmp.gt.f32.partialorder %v1083, %v1040
    %v1087 = vsel %vm1085, 1, 0
    %v1088 = vsel %vm1086, 1, 0
    %v1089 = vcvt.s32.f32 %v1087
    %v1090 = vcvt.s32.f32 %v1088
    %v1091 = vadd.f32 %v1075, %v1089
    %v1092 = vadd.f32 %v1076, %v1090
    %1093 = vset.pattern.permute.xlu0 3
    %1094 = vperm.xlu0 %1093, %v1035
    %v1095 = vpop.permute.xlu0 %1094
    %1097 = vset.pattern.permute.xlu0 3
    %1098 = vperm.xlu0 %1097, %v1040
    %v1099 = vpop.permute.xlu0 %1098
    %vm1101 = vcmp.gt.f32.partialorder %v1095, %v1035
    %vm1102 = vcmp.gt.f32.partialorder %v1099, %v1040
    %v1103 = vsel %vm1101, 1, 0
    %v1104 = vsel %vm1102, 1, 0
    %v1105 = vcvt.s32.f32 %v1103
    %v1106 = vcvt.s32.f32 %v1104
    %v1107 = vadd.f32 %v1091, %v1105
    %v1108 = vadd.f32 %v1092, %v1106
    %vm1109 = vcmp.lt.f32.partialorder %v1107, 2.0
    %vm1110 = vcmp.lt.f32.partialorder %v1108, 2.0
    %v1111 = vsel %vm1109, 1, 0
    %v1112 = vsel %vm1110, 1, 0
    %v1113 = vcvt.s32.f32 %v1111
    %v1114 = vcvt.s32.f32 %v1112
    %v1115 = vpack.c.bf16 %v953, %v952
    %v1116 = vld [vmem:[%s12] sm:$0xff]
    %v1117 = vld [vmem:[%s12 + $0x8] sm:$0xff]
    %v1118 = vld [vmem:[%s12 + $0x10] sm:$0xff]
    %v1119 = vld [vmem:[%s12 + $0x18] sm:$0xff]
    %v1120 = vld [vmem:[%s12 + $0x20] sm:$0xff]
    %v1121 = vld [vmem:[%s12 + $0x28] sm:$0xff]
    %v1122 = vld [vmem:[%s12 + $0x30] sm:$0xff]
    %v1123 = vld [vmem:[%s12 + $0x38] sm:$0xff]
    %v1124 = vld [vmem:[%s12 + $0x40] sm:$0xff]
    %v1125 = vld [vmem:[%s12 + $0x48] sm:$0xff]
    %v1126 = vld [vmem:[%s12 + $0x50] sm:$0xff]
    %v1127 = vld [vmem:[%s12 + $0x58] sm:$0xff]
    %v1128 = vld [vmem:[%s12 + $0x60] sm:$0xff]
    %v1129 = vld [vmem:[%s12 + $0x68] sm:$0xff]
    %v1130 = vld [vmem:[%s12 + $0x70] sm:$0xff]
    %v1131 = vld [vmem:[%s12 + $0x78] sm:$0xff]
    %v1132 = vld [vmem:[%s12 + $0x80] sm:$0xff]
    %v1133 = vld [vmem:[%s12 + $0x88] sm:$0xff]
    %v1134 = vld [vmem:[%s12 + $0x90] sm:$0xff]
    %v1135 = vld [vmem:[%s12 + $0x98] sm:$0xff]
    %v1136 = vld [vmem:[%s12 + $0xa0] sm:$0xff]
    %v1137 = vld [vmem:[%s12 + $0xa8] sm:$0xff]
    %v1138 = vld [vmem:[%s12 + $0xb0] sm:$0xff]
    %v1139 = vld [vmem:[%s12 + $0xb8] sm:$0xff]
    %v1140 = vld [vmem:[%s12 + $0xc0] sm:$0xff]
    %v1141 = vld [vmem:[%s12 + $0xc8] sm:$0xff]
    %v1142 = vld [vmem:[%s12 + $0xd0] sm:$0xff]
    %v1143 = vld [vmem:[%s12 + $0xd8] sm:$0xff]
    %v1144 = vld [vmem:[%s12 + $0xe0] sm:$0xff]
    %v1145 = vld [vmem:[%s12 + $0xe8] sm:$0xff]
    %v1146 = vld [vmem:[%s12 + $0xf0] sm:$0xff]
    %v1147 = vld [vmem:[%s12 + $0xf8] sm:$0xff]
    %v1180 = vunpack.c.l.b16 %v1116
    %v1181 = vunpack.c.h.b16 %v1116
    %v1182 = vunpack.c.l.b16 %v1117
    %v1183 = vunpack.c.h.b16 %v1117
    %v1184 = vunpack.c.l.b16 %v1118
    %v1185 = vunpack.c.h.b16 %v1118
    %v1186 = vunpack.c.l.b16 %v1119
    %v1187 = vunpack.c.h.b16 %v1119
    %v1188 = vunpack.c.l.b16 %v1120
    %v1189 = vunpack.c.h.b16 %v1120
    %v1190 = vunpack.c.l.b16 %v1121
    %v1191 = vunpack.c.h.b16 %v1121
    %v1192 = vunpack.c.l.b16 %v1122
    %v1193 = vunpack.c.h.b16 %v1122
    %v1194 = vunpack.c.l.b16 %v1123
    %v1195 = vunpack.c.h.b16 %v1123
    %v1196 = vunpack.c.l.b16 %v1124
    %v1197 = vunpack.c.h.b16 %v1124
    %v1198 = vunpack.c.l.b16 %v1125
    %v1199 = vunpack.c.h.b16 %v1125
    %v1200 = vunpack.c.l.b16 %v1126
    %v1201 = vunpack.c.h.b16 %v1126
    %v1202 = vunpack.c.l.b16 %v1127
    %v1203 = vunpack.c.h.b16 %v1127
    %v1204 = vunpack.c.l.b16 %v1128
    %v1205 = vunpack.c.h.b16 %v1128
    %v1206 = vunpack.c.l.b16 %v1129
    %v1207 = vunpack.c.h.b16 %v1129
    %v1208 = vunpack.c.l.b16 %v1130
    %v1209 = vunpack.c.h.b16 %v1130
    %v1210 = vunpack.c.l.b16 %v1131
    %v1211 = vunpack.c.h.b16 %v1131
    %v1212 = vunpack.c.l.b16 %v1132
    %v1213 = vunpack.c.h.b16 %v1132
    %v1214 = vunpack.c.l.b16 %v1133
    %v1215 = vunpack.c.h.b16 %v1133
    %v1216 = vunpack.c.l.b16 %v1134
    %v1217 = vunpack.c.h.b16 %v1134
    %v1218 = vunpack.c.l.b16 %v1135
    %v1219 = vunpack.c.h.b16 %v1135
    %v1220 = vunpack.c.l.b16 %v1136
    %v1221 = vunpack.c.h.b16 %v1136
    %v1222 = vunpack.c.l.b16 %v1137
    %v1223 = vunpack.c.h.b16 %v1137
    %v1224 = vunpack.c.l.b16 %v1138
    %v1225 = vunpack.c.h.b16 %v1138
    %v1226 = vunpack.c.l.b16 %v1139
    %v1227 = vunpack.c.h.b16 %v1139
    %v1228 = vunpack.c.l.b16 %v1140
    %v1229 = vunpack.c.h.b16 %v1140
    %v1230 = vunpack.c.l.b16 %v1141
    %v1231 = vunpack.c.h.b16 %v1141
    %v1232 = vunpack.c.l.b16 %v1142
    %v1233 = vunpack.c.h.b16 %v1142
    %v1234 = vunpack.c.l.b16 %v1143
    %v1235 = vunpack.c.h.b16 %v1143
    %v1236 = vunpack.c.l.b16 %v1144
    %v1237 = vunpack.c.h.b16 %v1144
    %v1238 = vunpack.c.l.b16 %v1145
    %v1239 = vunpack.c.h.b16 %v1145
    %v1240 = vunpack.c.l.b16 %v1146
    %v1241 = vunpack.c.h.b16 %v1146
    %v1242 = vunpack.c.l.b16 %v1147
    %v1243 = vunpack.c.h.b16 %v1147
    %v1244 = vpack.c.b16 %v1188, %v1180
    %v1245 = vpack.c.b16 %v1189, %v1181
    %v1246 = vpack.c.b16 %v1190, %v1182
    %v1247 = vpack.c.b16 %v1191, %v1183
    %v1248 = vpack.c.b16 %v1192, %v1184
    %v1249 = vpack.c.b16 %v1193, %v1185
    %v1250 = vpack.c.b16 %v1194, %v1186
    %v1251 = vpack.c.b16 %v1195, %v1187
    %v1252 = vpack.c.b16 %v1204, %v1196
    %v1253 = vpack.c.b16 %v1205, %v1197
    %v1254 = vpack.c.b16 %v1206, %v1198
    %v1255 = vpack.c.b16 %v1207, %v1199
    %v1256 = vpack.c.b16 %v1208, %v1200
    %v1257 = vpack.c.b16 %v1209, %v1201
    %v1258 = vpack.c.b16 %v1210, %v1202
    %v1259 = vpack.c.b16 %v1211, %v1203
    %v1260 = vpack.c.b16 %v1220, %v1212
    %v1261 = vpack.c.b16 %v1221, %v1213
    %v1262 = vpack.c.b16 %v1222, %v1214
    %v1263 = vpack.c.b16 %v1223, %v1215
    %v1264 = vpack.c.b16 %v1224, %v1216
    %v1265 = vpack.c.b16 %v1225, %v1217
    %v1266 = vpack.c.b16 %v1226, %v1218
    %v1267 = vpack.c.b16 %v1227, %v1219
    %v1268 = vpack.c.b16 %v1236, %v1228
    %v1269 = vpack.c.b16 %v1237, %v1229
    %v1270 = vpack.c.b16 %v1238, %v1230
    %v1271 = vpack.c.b16 %v1239, %v1231
    %v1272 = vpack.c.b16 %v1240, %v1232
    %v1273 = vpack.c.b16 %v1241, %v1233
    %v1274 = vpack.c.b16 %v1242, %v1234
    %v1275 = vpack.c.b16 %v1243, %v1235
    %v1309 = vsel %vm107, %v1115, 0
    %1311 = vmatprep.subr.bf16.mxu0 %v1245
    %1312 = vmatpush1.bf16.msra.mxu0 %v1244
    %1313 = vmatprep.subr.bf16.mxu0 %v1253
    %1314 = vmatpush1.bf16.msra.mxu0 %v1252
    %1315 = vmatprep.subr.bf16.mxu0 %v1261
    %1316 = vmatpush1.bf16.msra.mxu0 %v1260
    %1317 = vmatprep.subr.bf16.mxu0 %v1269
    %1318 = vmatpush1.bf16.msra.mxu0 %v1268
    %1319 = vmatprep.subr.bf16.mxu0 0
    %1320 = vmatpush1.bf16.msra.mxu0 0
    %1321 = vmatprep.subr.bf16.mxu0 0
    %1322 = vmatpush1.bf16.msra.mxu0 0
    %1323 = vmatprep.subr.bf16.mxu0 0
    %1324 = vmatpush1.bf16.msra.mxu0 0
    %1325 = vmatprep.subr.bf16.mxu0 0
    %1326 = vmatpush1.bf16.msra.mxu0 0
    %1327 = vmatprep.subr.bf16.mxu0 0
    %1328 = vmatpush1.bf16.msra.mxu0 0
    %1329 = vmatprep.subr.bf16.mxu0 0
    %1330 = vmatpush1.bf16.msra.mxu0 0
    %1331 = vmatprep.subr.bf16.mxu0 0
    %1332 = vmatpush1.bf16.msra.mxu0 0
    %1333 = vmatprep.subr.bf16.mxu0 0
    %1334 = vmatpush1.bf16.msra.mxu0 0
    %1335 = vmatprep.subr.bf16.mxu0 0
    %1336 = vmatpush1.bf16.msra.mxu0 0
    %1337 = vmatprep.subr.bf16.mxu0 0
    %1338 = vmatpush1.bf16.msra.mxu0 0
    %1339 = vmatprep.subr.bf16.mxu0 0
    %1340 = vmatpush1.bf16.msra.mxu0 0
    %1341 = vmatprep.subr.bf16.mxu0 0
    %1342 = vmatpush1.bf16.msra.mxu0 0
    %1343 = vmatprep.mubr.bf16.mxu0 0
    %1344 = vmatmul.mubr.bf16.gmra.mrb[0].mxu0 %v1309
    %v1345 = vpop.f32.mrb[0].mxu0
    %v1346 = vadd.f32 0.0, %v1345
    %v1347 = vpop.f32.mrb[0].mxu0
    %v1348 = vadd.f32 0.0, %v1347
    %v1349 = vpop.f32.mrb[0].mxu0
    %v1350 = vadd.f32 0.0, %v1349
    %v1351 = vpop.f32.mrb[0].mxu0
    %v1352 = vadd.f32 0.0, %v1351
    %1353 = vdwg.mxu0
    %1354 = vmatprep.subr.bf16.mxu0 %v1247
    %1355 = vmatpush1.bf16.msra.mxu0 %v1246
    %1356 = vmatprep.subr.bf16.mxu0 %v1255
    %1357 = vmatpush1.bf16.msra.mxu0 %v1254
    %1358 = vmatprep.subr.bf16.mxu0 %v1263
    %1359 = vmatpush1.bf16.msra.mxu0 %v1262
    %1360 = vmatprep.subr.bf16.mxu0 %v1271
    %1361 = vmatpush1.bf16.msra.mxu0 %v1270
    %1362 = vmatprep.subr.bf16.mxu0 0
    %1363 = vmatpush1.bf16.msra.mxu0 0
    %1364 = vmatprep.subr.bf16.mxu0 0
    %1365 = vmatpush1.bf16.msra.mxu0 0
    %1366 = vmatprep.subr.bf16.mxu0 0
    %1367 = vmatpush1.bf16.msra.mxu0 0
    %1368 = vmatprep.subr.bf16.mxu0 0
    %1369 = vmatpush1.bf16.msra.mxu0 0
    %1370 = vmatprep.subr.bf16.mxu0 0
    %1371 = vmatpush1.bf16.msra.mxu0 0
    %1372 = vmatprep.subr.bf16.mxu0 0
    %1373 = vmatpush1.bf16.msra.mxu0 0
    %1374 = vmatprep.subr.bf16.mxu0 0
    %1375 = vmatpush1.bf16.msra.mxu0 0
    %1376 = vmatprep.subr.bf16.mxu0 0
    %1377 = vmatpush1.bf16.msra.mxu0 0
    %1378 = vmatprep.subr.bf16.mxu0 0
    %1379 = vmatpush1.bf16.msra.mxu0 0
    %1380 = vmatprep.subr.bf16.mxu0 0
    %1381 = vmatpush1.bf16.msra.mxu0 0
    %1382 = vmatprep.subr.bf16.mxu0 0
    %1383 = vmatpush1.bf16.msra.mxu0 0
    %1384 = vmatprep.subr.bf16.mxu0 0
    %1385 = vmatpush1.bf16.msra.mxu0 0
    %1386 = vmatprep.mubr.bf16.mxu0 0
    %1387 = vmatmul.mubr.bf16.gmra.mrb[0].mxu0 %v1309
    %v1388 = vpop.f32.mrb[0].mxu0
    %v1389 = vadd.f32 0.0, %v1388
    %v1390 = vpop.f32.mrb[0].mxu0
    %v1391 = vadd.f32 0.0, %v1390
    %v1392 = vpop.f32.mrb[0].mxu0
    %v1393 = vadd.f32 0.0, %v1392
    %v1394 = vpop.f32.mrb[0].mxu0
    %v1395 = vadd.f32 0.0, %v1394
    %1396 = vdwg.mxu0
    %1397 = vmatprep.subr.bf16.mxu0 %v1249
    %1398 = vmatpush1.bf16.msra.mxu0 %v1248
    %1399 = vmatprep.subr.bf16.mxu0 %v1257
    %1400 = vmatpush1.bf16.msra.mxu0 %v1256
    %1401 = vmatprep.subr.bf16.mxu0 %v1265
    %1402 = vmatpush1.bf16.msra.mxu0 %v1264
    %1403 = vmatprep.subr.bf16.mxu0 %v1273
    %1404 = vmatpush1.bf16.msra.mxu0 %v1272
    %1405 = vmatprep.subr.bf16.mxu0 0
    %1406 = vmatpush1.bf16.msra.mxu0 0
    %1407 = vmatprep.subr.bf16.mxu0 0
    %1408 = vmatpush1.bf16.msra.mxu0 0
    %1409 = vmatprep.subr.bf16.mxu0 0
    %1410 = vmatpush1.bf16.msra.mxu0 0
    %1411 = vmatprep.subr.bf16.mxu0 0
    %1412 = vmatpush1.bf16.msra.mxu0 0
    %1413 = vmatprep.subr.bf16.mxu0 0
    %1414 = vmatpush1.bf16.msra.mxu0 0
    %1415 = vmatprep.subr.bf16.mxu0 0
    %1416 = vmatpush1.bf16.msra.mxu0 0
    %1417 = vmatprep.subr.bf16.mxu0 0
    %1418 = vmatpush1.bf16.msra.mxu0 0
    %1419 = vmatprep.subr.bf16.mxu0 0
    %1420 = vmatpush1.bf16.msra.mxu0 0
    %1421 = vmatprep.subr.bf16.mxu0 0
    %1422 = vmatpush1.bf16.msra.mxu0 0
    %1423 = vmatprep.subr.bf16.mxu0 0
    %1424 = vmatpush1.bf16.msra.mxu0 0
    %1425 = vmatprep.subr.bf16.mxu0 0
    %1426 = vmatpush1.bf16.msra.mxu0 0
    %1427 = vmatprep.subr.bf16.mxu0 0
    %1428 = vmatpush1.bf16.msra.mxu0 0
    %1429 = vmatprep.mubr.bf16.mxu0 0
    %1430 = vmatmul.mubr.bf16.gmra.mrb[0].mxu0 %v1309
    %v1431 = vpop.f32.mrb[0].mxu0
    %v1432 = vadd.f32 0.0, %v1431
    %v1433 = vpop.f32.mrb[0].mxu0
    %v1434 = vadd.f32 0.0, %v1433
    %v1435 = vpop.f32.mrb[0].mxu0
    %v1436 = vadd.f32 0.0, %v1435
    %v1437 = vpop.f32.mrb[0].mxu0
    %v1438 = vadd.f32 0.0, %v1437
    %1439 = vdwg.mxu0
    %1440 = vmatprep.subr.bf16.mxu0 %v1251
    %1441 = vmatpush1.bf16.msra.mxu0 %v1250
    %1442 = vmatprep.subr.bf16.mxu0 %v1259
    %1443 = vmatpush1.bf16.msra.mxu0 %v1258
    %1444 = vmatprep.subr.bf16.mxu0 %v1267
    %1445 = vmatpush1.bf16.msra.mxu0 %v1266
    %1446 = vmatprep.subr.bf16.mxu0 %v1275
    %1447 = vmatpush1.bf16.msra.mxu0 %v1274
    %1448 = vmatprep.subr.bf16.mxu0 0
    %1449 = vmatpush1.bf16.msra.mxu0 0
    %1450 = vmatprep.subr.bf16.mxu0 0
    %1451 = vmatpush1.bf16.msra.mxu0 0
    %1452 = vmatprep.subr.bf16.mxu0 0
    %1453 = vmatpush1.bf16.msra.mxu0 0
    %1454 = vmatprep.subr.bf16.mxu0 0
    %1455 = vmatpush1.bf16.msra.mxu0 0
    %1456 = vmatprep.subr.bf16.mxu0 0
    %1457 = vmatpush1.bf16.msra.mxu0 0
    %1458 = vmatprep.subr.bf16.mxu0 0
    %1459 = vmatpush1.bf16.msra.mxu0 0
    %1460 = vmatprep.subr.bf16.mxu0 0
    %1461 = vmatpush1.bf16.msra.mxu0 0
    %1462 = vmatprep.subr.bf16.mxu0 0
    %1463 = vmatpush1.bf16.msra.mxu0 0
    %1464 = vmatprep.subr.bf16.mxu0 0
    %1465 = vmatpush1.bf16.msra.mxu0 0
    %1466 = vmatprep.subr.bf16.mxu0 0
    %1467 = vmatpush1.bf16.msra.mxu0 0
    %1468 = vmatprep.subr.bf16.mxu0 0
    %1469 = vmatpush1.bf16.msra.mxu0 0
    %1470 = vmatprep.subr.bf16.mxu0 0
    %1471 = vmatpush1.bf16.msra.mxu0 0
    %1472 = vmatprep.mubr.bf16.mxu0 0
    %1473 = vmatmul.mubr.bf16.gmra.mrb[0].mxu0 %v1309
    %v1474 = vpop.f32.mrb[0].mxu0
    %v1475 = vadd.f32 0.0, %v1474
    %v1476 = vpop.f32.mrb[0].mxu0
    %v1477 = vadd.f32 0.0, %v1476
    %v1478 = vpop.f32.mrb[0].mxu0
    %v1479 = vadd.f32 0.0, %v1478
    %v1480 = vpop.f32.mrb[0].mxu0
    %v1481 = vadd.f32 0.0, %v1480
    %1482 = vdwg.mxu0
    %v1483 = vxor.u32 %v1346, 2147483648
    %v1484 = vxor.u32 %v1348, 2147483648
    %v1485 = vxor.u32 %v1389, 2147483648
    %v1486 = vxor.u32 %v1391, 2147483648
    %v1487 = vxor.u32 %v1350, 2147483648
    %v1488 = vxor.u32 %v1352, 2147483648
    %v1489 = vxor.u32 %v1393, 2147483648
    %v1490 = vxor.u32 %v1395, 2147483648
    %v1491 = vmul.f32 %v1483, 1.442695
    %v1492 = vpow.pop %v1491
    %v1493 = vmul.f32 %v1484, 1.442695
    %v1494 = vpow.pop %v1493
    %v1495 = vmul.f32 %v1485, 1.442695
    %v1496 = vpow.pop %v1495
    %v1497 = vmul.f32 %v1486, 1.442695
    %v1498 = vpow.pop %v1497
    %v1499 = vmul.f32 %v1487, 1.442695
    %v1500 = vpow.pop %v1499
    %v1501 = vmul.f32 %v1488, 1.442695
    %v1502 = vpow.pop %v1501
    %v1503 = vmul.f32 %v1489, 1.442695
    %v1504 = vpow.pop %v1503
    %v1505 = vmul.f32 %v1490, 1.442695
    %v1506 = vpow.pop %v1505
    %v1507 = vadd.f32 %v1492, 1.0
    %v1508 = vadd.f32 %v1494, 1.0
    %v1509 = vadd.f32 %v1496, 1.0
    %v1510 = vadd.f32 %v1498, 1.0
    %v1511 = vadd.f32 %v1500, 1.0
    %v1512 = vadd.f32 %v1502, 1.0
    %v1513 = vadd.f32 %v1504, 1.0
    %v1514 = vadd.f32 %v1506, 1.0
    %v1515 = vrcp.pop %v1507
    %v1516 = vmul.f32 1.0, %v1515
    %v1517 = vrcp.pop %v1508
    %v1518 = vmul.f32 1.0, %v1517
    %v1519 = vrcp.pop %v1509
    %v1520 = vmul.f32 1.0, %v1519
    %v1521 = vrcp.pop %v1510
    %v1522 = vmul.f32 1.0, %v1521
    %v1523 = vrcp.pop %v1511
    %v1524 = vmul.f32 1.0, %v1523
    %v1525 = vrcp.pop %v1512
    %v1526 = vmul.f32 1.0, %v1525
    %v1527 = vrcp.pop %v1513
    %v1528 = vmul.f32 1.0, %v1527
    %v1529 = vrcp.pop %v1514
    %v1530 = vmul.f32 1.0, %v1529
    %v1531 = vmul.f32 %v1346, %v1516
    %v1532 = vmul.f32 %v1348, %v1518
    %v1533 = vmul.f32 %v1389, %v1520
    %v1534 = vmul.f32 %v1391, %v1522
    %v1535 = vmul.f32 %v1350, %v1524
    %v1536 = vmul.f32 %v1352, %v1526
    %v1537 = vmul.f32 %v1393, %v1528
    %v1538 = vmul.f32 %v1395, %v1530
    %v1539 = vmul.f32 %v1531, %v1432
    %v1540 = vmul.f32 %v1532, %v1434
    %v1541 = vmul.f32 %v1533, %v1475
    %v1542 = vmul.f32 %v1534, %v1477
    %v1543 = vmul.f32 %v1535, %v1436
    %v1544 = vmul.f32 %v1536, %v1438
    %v1545 = vmul.f32 %v1537, %v1479
    %v1546 = vmul.f32 %v1538, %v1481
    %v1547 = vld [vmem:[#allocation8] sm:$0xff]
    %v1548 = vld [vmem:[#allocation8 + $0x8] sm:$0xff]
    %v1551 = vcombine.high %v1547, %v1547
    %v1552 = vcombine.high %v1548, %v1548
    %vm1553 = vcmask 31744
    %v1555 = vsel %vm1553, %v1113, 0
    %v1558 = vsel %vm1553, %v1114, 0
    %vm1560 = vcmask 1043456
    %v1561 = vsel %vm1560, %v1547, 0
    %v1563 = vsel %vm1560, %v1551, 0
    %v1565 = vsel %vm1560, %v1548, 0
    %v1567 = vsel %vm1560, %v1552, 0
    %1569 = vmatprep.subr.mxu0 %v1563
    %1570 = vmatpush1.msra.mxu0 %v1561
    %1571 = vmatprep.subr.mxu0 0.0
    %1572 = vmatpush1.msra.mxu0 0.0
    %1573 = vmatprep.subr.mxu0 0.0
    %1574 = vmatpush1.msra.mxu0 0.0
    %1575 = vmatprep.subr.mxu0 0.0
    %1576 = vmatpush1.msra.mxu0 0.0
    %1577 = vmatprep.subr.mxu0 0.0
    %1578 = vmatpush1.msra.mxu0 0.0
    %1579 = vmatprep.subr.mxu0 0.0
    %1580 = vmatpush1.msra.mxu0 0.0
    %1581 = vmatprep.subr.mxu0 0.0
    %1582 = vmatpush1.msra.mxu0 0.0
    %1583 = vmatprep.subr.mxu0 0.0
    %1584 = vmatpush1.msra.mxu0 0.0
    %1585 = vmatprep.subr.mxu0 0.0
    %1586 = vmatpush1.msra.mxu0 0.0
    %1587 = vmatprep.subr.mxu0 0.0
    %1588 = vmatpush1.msra.mxu0 0.0
    %1589 = vmatprep.subr.mxu0 0.0
    %1590 = vmatpush1.msra.mxu0 0.0
    %1591 = vmatprep.subr.mxu0 0.0
    %1592 = vmatpush1.msra.mxu0 0.0
    %1593 = vmatprep.subr.mxu0 0.0
    %1594 = vmatpush1.msra.mxu0 0.0
    %1595 = vmatprep.subr.mxu0 0.0
    %1596 = vmatpush1.msra.mxu0 0.0
    %1597 = vmatprep.subr.mxu0 0.0
    %1598 = vmatpush1.msra.mxu0 0.0
    %1599 = vmatprep.subr.mxu0 0.0
    %1600 = vmatpush1.msra.mxu0 0.0
    %1601 = vmatprep.subr.mxu0 0.0
    %1602 = vmatpush1.msra.mxu0 0.0
    %1603 = vmatprep.subr.mxu0 0.0
    %1604 = vmatpush1.msra.mxu0 0.0
    %1605 = vmatprep.subr.mxu0 0.0
    %1606 = vmatpush1.msra.mxu0 0.0
    %1607 = vmatprep.subr.mxu0 0.0
    %1608 = vmatpush1.msra.mxu0 0.0
    %1609 = vmatprep.subr.mxu0 0.0
    %1610 = vmatpush1.msra.mxu0 0.0
    %1611 = vmatprep.subr.mxu0 0.0
    %1612 = vmatpush1.msra.mxu0 0.0
    %1613 = vmatprep.subr.mxu0 0.0
    %1614 = vmatpush1.msra.mxu0 0.0
    %1615 = vmatprep.subr.mxu0 0.0
    %1616 = vmatpush1.msra.mxu0 0.0
    %1617 = vmatprep.subr.mxu0 0.0
    %1618 = vmatpush1.msra.mxu0 0.0
    %1619 = vmatprep.subr.mxu0 0.0
    %1620 = vmatpush1.msra.mxu0 0.0
    %1621 = vmatprep.subr.mxu0 0.0
    %1622 = vmatpush1.msra.mxu0 0.0
    %1623 = vmatprep.subr.mxu0 0.0
    %1624 = vmatpush1.msra.mxu0 0.0
    %1625 = vmatprep.subr.mxu0 0.0
    %1626 = vmatpush1.msra.mxu0 0.0
    %1627 = vmatprep.subr.mxu0 0.0
    %1628 = vmatpush1.msra.mxu0 0.0
    %1629 = vmatprep.subr.mxu0 0.0
    %1630 = vmatpush1.msra.mxu0 0.0
    %1631 = vmatprep.subr.mxu0 0.0
    %1632 = vmatpush1.msra.mxu0 0.0
    %1633 = vmatprep.mubr.f32.mxu0 0.0
    %1634 = vmatmul.mubr.f32.gmra.mrb[0].mxu0 %v1555
    %v1635 = vpop.f32.mrb[0].mxu0
    %v1636 = vadd.f32 0.0, %v1635
    %v1637 = vpop.f32.mrb[0].mxu0
    %v1638 = vadd.f32 0.0, %v1637
    %1639 = vmatprep.mubr.f32.mxu0 0.0
    %1640 = vmatmul.mubr.f32.gmra.mrb[0].mxu0 %v1558
    %v1641 = vpop.f32.mrb[0].mxu0
    %v1642 = vadd.f32 0.0, %v1641
    %v1643 = vpop.f32.mrb[0].mxu0
    %v1644 = vadd.f32 0.0, %v1643
    %1645 = vdwg.mxu0
    %1646 = vmatprep.subr.mxu0 %v1567
    %1647 = vmatpush1.msra.mxu0 %v1565
    %1648 = vmatprep.subr.mxu0 0.0
    %1649 = vmatpush1.msra.mxu0 0.0
    %1650 = vmatprep.subr.mxu0 0.0
    %1651 = vmatpush1.msra.mxu0 0.0
    %1652 = vmatprep.subr.mxu0 0.0
    %1653 = vmatpush1.msra.mxu0 0.0
    %1654 = vmatprep.subr.mxu0 0.0
    %1655 = vmatpush1.msra.mxu0 0.0
    %1656 = vmatprep.subr.mxu0 0.0
    %1657 = vmatpush1.msra.mxu0 0.0
    %1658 = vmatprep.subr.mxu0 0.0
    %1659 = vmatpush1.msra.mxu0 0.0
    %1660 = vmatprep.subr.mxu0 0.0
    %1661 = vmatpush1.msra.mxu0 0.0
    %1662 = vmatprep.subr.mxu0 0.0
    %1663 = vmatpush1.msra.mxu0 0.0
    %1664 = vmatprep.subr.mxu0 0.0
    %1665 = vmatpush1.msra.mxu0 0.0
    %1666 = vmatprep.subr.mxu0 0.0
    %1667 = vmatpush1.msra.mxu0 0.0
    %1668 = vmatprep.subr.mxu0 0.0
    %1669 = vmatpush1.msra.mxu0 0.0
    %1670 = vmatprep.subr.mxu0 0.0
    %1671 = vmatpush1.msra.mxu0 0.0
    %1672 = vmatprep.subr.mxu0 0.0
    %1673 = vmatpush1.msra.mxu0 0.0
    %1674 = vmatprep.subr.mxu0 0.0
    %1675 = vmatpush1.msra.mxu0 0.0
    %1676 = vmatprep.subr.mxu0 0.0
    %1677 = vmatpush1.msra.mxu0 0.0
    %1678 = vmatprep.subr.mxu0 0.0
    %1679 = vmatpush1.msra.mxu0 0.0
    %1680 = vmatprep.subr.mxu0 0.0
    %1681 = vmatpush1.msra.mxu0 0.0
    %1682 = vmatprep.subr.mxu0 0.0
    %1683 = vmatpush1.msra.mxu0 0.0
    %1684 = vmatprep.subr.mxu0 0.0
    %1685 = vmatpush1.msra.mxu0 0.0
    %1686 = vmatprep.subr.mxu0 0.0
    %1687 = vmatpush1.msra.mxu0 0.0
    %1688 = vmatprep.subr.mxu0 0.0
    %1689 = vmatpush1.msra.mxu0 0.0
    %1690 = vmatprep.subr.mxu0 0.0
    %1691 = vmatpush1.msra.mxu0 0.0
    %1692 = vmatprep.subr.mxu0 0.0
    %1693 = vmatpush1.msra.mxu0 0.0
    %1694 = vmatprep.subr.mxu0 0.0
    %1695 = vmatpush1.msra.mxu0 0.0
    %1696 = vmatprep.subr.mxu0 0.0
    %1697 = vmatpush1.msra.mxu0 0.0
    %1698 = vmatprep.subr.mxu0 0.0
    %1699 = vmatpush1.msra.mxu0 0.0
    %1700 = vmatprep.subr.mxu0 0.0
    %1701 = vmatpush1.msra.mxu0 0.0
    %1702 = vmatprep.subr.mxu0 0.0
    %1703 = vmatpush1.msra.mxu0 0.0
    %1704 = vmatprep.subr.mxu0 0.0
    %1705 = vmatpush1.msra.mxu0 0.0
    %1706 = vmatprep.subr.mxu0 0.0
    %1707 = vmatpush1.msra.mxu0 0.0
    %1708 = vmatprep.subr.mxu0 0.0
    %1709 = vmatpush1.msra.mxu0 0.0
    %1710 = vmatprep.mubr.f32.mxu0 0.0
    %1711 = vmatmul.mubr.f32.gmra.mrb[0].mxu0 %v1555
    %v1712 = vpop.f32.mrb[0].mxu0
    %v1713 = vadd.f32 0.0, %v1712
    %v1714 = vpop.f32.mrb[0].mxu0
    %v1715 = vadd.f32 0.0, %v1714
    %1716 = vmatprep.mubr.f32.mxu0 0.0
    %1717 = vmatmul.mubr.f32.gmra.mrb[0].mxu0 %v1558
    %v1718 = vpop.f32.mrb[0].mxu0
    %v1719 = vadd.f32 0.0, %v1718
    %v1720 = vpop.f32.mrb[0].mxu0
    %v1721 = vadd.f32 0.0, %v1720
    %1722 = vdwg.mxu0
    %v1723 = vmul.f32 %v1539, %v1636
    %v1724 = vmul.f32 %v1540, %v1638
    %v1725 = vmul.f32 %v1541, %v1713
    %v1726 = vmul.f32 %v1542, %v1715
    %v1727 = vmul.f32 %v1543, %v1642
    %v1728 = vmul.f32 %v1544, %v1644
    %v1729 = vmul.f32 %v1545, %v1719
    %v1730 = vmul.f32 %v1546, %v1721
    %v1731 = vpack.c.bf16 %v1727, %v1723
    %v1732 = vpack.c.bf16 %v1728, %v1724
    %v1733 = vpack.c.bf16 %v1729, %v1725
    %v1734 = vpack.c.bf16 %v1730, %v1726
    %v1735 = vld [vmem:[%s14] sm:$0xf]
    %v1736 = vld [vmem:[%s14 + $0x4] sm:$0xf]
    %v1737 = vld [vmem:[%s14 + $0x8] sm:$0xf]
    %v1738 = vld [vmem:[%s14 + $0xc] sm:$0xf]
    %v1739 = vld [vmem:[%s14 + $0x10] sm:$0xf]
    %v1740 = vld [vmem:[%s14 + $0x14] sm:$0xf]
    %v1741 = vld [vmem:[%s14 + $0x18] sm:$0xf]
    %v1742 = vld [vmem:[%s14 + $0x1c] sm:$0xf]
    %v1743 = vld [vmem:[%s14 + $0x20] sm:$0xf]
    %v1744 = vld [vmem:[%s14 + $0x24] sm:$0xf]
    %v1745 = vld [vmem:[%s14 + $0x28] sm:$0xf]
    %v1746 = vld [vmem:[%s14 + $0x2c] sm:$0xf]
    %v1747 = vld [vmem:[%s14 + $0x30] sm:$0xf]
    %v1748 = vld [vmem:[%s14 + $0x34] sm:$0xf]
    %v1749 = vld [vmem:[%s14 + $0x38] sm:$0xf]
    %v1750 = vld [vmem:[%s14 + $0x3c] sm:$0xf]
    %v1751 = vld [vmem:[%s14 + $0x40] sm:$0xf]
    %v1752 = vld [vmem:[%s14 + $0x44] sm:$0xf]
    %v1753 = vld [vmem:[%s14 + $0x48] sm:$0xf]
    %v1754 = vld [vmem:[%s14 + $0x4c] sm:$0xf]
    %v1755 = vld [vmem:[%s14 + $0x50] sm:$0xf]
    %v1756 = vld [vmem:[%s14 + $0x54] sm:$0xf]
    %v1757 = vld [vmem:[%s14 + $0x58] sm:$0xf]
    %v1758 = vld [vmem:[%s14 + $0x5c] sm:$0xf]
    %v1759 = vld [vmem:[%s14 + $0x60] sm:$0xf]
    %v1760 = vld [vmem:[%s14 + $0x64] sm:$0xf]
    %v1761 = vld [vmem:[%s14 + $0x68] sm:$0xf]
    %v1762 = vld [vmem:[%s14 + $0x6c] sm:$0xf]
    %v1763 = vld [vmem:[%s14 + $0x70] sm:$0xf]
    %v1764 = vld [vmem:[%s14 + $0x74] sm:$0xf]
    %v1765 = vld [vmem:[%s14 + $0x78] sm:$0xf]
    %v1766 = vld [vmem:[%s14 + $0x7c] sm:$0xf]
    %v1767 = vld [vmem:[%s14 + $0x80] sm:$0xf]
    %v1768 = vld [vmem:[%s14 + $0x84] sm:$0xf]
    %v1769 = vld [vmem:[%s14 + $0x88] sm:$0xf]
    %v1770 = vld [vmem:[%s14 + $0x8c] sm:$0xf]
    %v1771 = vld [vmem:[%s14 + $0x90] sm:$0xf]
    %v1772 = vld [vmem:[%s14 + $0x94] sm:$0xf]
    %v1773 = vld [vmem:[%s14 + $0x98] sm:$0xf]
    %v1774 = vld [vmem:[%s14 + $0x9c] sm:$0xf]
    %v1775 = vld [vmem:[%s14 + $0xa0] sm:$0xf]
    %v1776 = vld [vmem:[%s14 + $0xa4] sm:$0xf]
    %v1777 = vld [vmem:[%s14 + $0xa8] sm:$0xf]
    %v1778 = vld [vmem:[%s14 + $0xac] sm:$0xf]
    %v1779 = vld [vmem:[%s14 + $0xb0] sm:$0xf]
    %v1780 = vld [vmem:[%s14 + $0xb4] sm:$0xf]
    %v1781 = vld [vmem:[%s14 + $0xb8] sm:$0xf]
    %v1782 = vld [vmem:[%s14 + $0xbc] sm:$0xf]
    %v1783 = vld [vmem:[%s14 + $0xc0] sm:$0xf]
    %v1784 = vld [vmem:[%s14 + $0xc4] sm:$0xf]
    %v1785 = vld [vmem:[%s14 + $0xc8] sm:$0xf]
    %v1786 = vld [vmem:[%s14 + $0xcc] sm:$0xf]
    %v1787 = vld [vmem:[%s14 + $0xd0] sm:$0xf]
    %v1788 = vld [vmem:[%s14 + $0xd4] sm:$0xf]
    %v1789 = vld [vmem:[%s14 + $0xd8] sm:$0xf]
    %v1790 = vld [vmem:[%s14 + $0xdc] sm:$0xf]
    %v1791 = vld [vmem:[%s14 + $0xe0] sm:$0xf]
    %v1792 = vld [vmem:[%s14 + $0xe4] sm:$0xf]
    %v1793 = vld [vmem:[%s14 + $0xe8] sm:$0xf]
    %v1794 = vld [vmem:[%s14 + $0xec] sm:$0xf]
    %v1795 = vld [vmem:[%s14 + $0xf0] sm:$0xf]
    %v1796 = vld [vmem:[%s14 + $0xf4] sm:$0xf]
    %v1797 = vld [vmem:[%s14 + $0xf8] sm:$0xf]
    %v1798 = vld [vmem:[%s14 + $0xfc] sm:$0xf]
    %v1863 = vunpack.c.l.b16 %v1735
    %v1864 = vunpack.c.l.b16 %v1736
    %v1865 = vunpack.c.l.b16 %v1737
    %v1866 = vunpack.c.l.b16 %v1738
    %v1867 = vunpack.c.l.b16 %v1739
    %v1868 = vunpack.c.l.b16 %v1740
    %v1869 = vunpack.c.l.b16 %v1741
    %v1870 = vunpack.c.l.b16 %v1742
    %v1871 = vunpack.c.l.b16 %v1743
    %v1872 = vunpack.c.l.b16 %v1744
    %v1873 = vunpack.c.l.b16 %v1745
    %v1874 = vunpack.c.l.b16 %v1746
    %v1875 = vunpack.c.l.b16 %v1747
    %v1876 = vunpack.c.l.b16 %v1748
    %v1877 = vunpack.c.l.b16 %v1749
    %v1878 = vunpack.c.l.b16 %v1750
    %v1879 = vunpack.c.l.b16 %v1751
    %v1880 = vunpack.c.l.b16 %v1752
    %v1881 = vunpack.c.l.b16 %v1753
    %v1882 = vunpack.c.l.b16 %v1754
    %v1883 = vunpack.c.l.b16 %v1755
    %v1884 = vunpack.c.l.b16 %v1756
    %v1885 = vunpack.c.l.b16 %v1757
    %v1886 = vunpack.c.l.b16 %v1758
    %v1887 = vunpack.c.l.b16 %v1759
    %v1888 = vunpack.c.l.b16 %v1760
    %v1889 = vunpack.c.l.b16 %v1761
    %v1890 = vunpack.c.l.b16 %v1762
    %v1891 = vunpack.c.l.b16 %v1763
    %v1892 = vunpack.c.l.b16 %v1764
    %v1893 = vunpack.c.l.b16 %v1765
    %v1894 = vunpack.c.l.b16 %v1766
    %v1895 = vunpack.c.l.b16 %v1767
    %v1896 = vunpack.c.l.b16 %v1768
    %v1897 = vunpack.c.l.b16 %v1769
    %v1898 = vunpack.c.l.b16 %v1770
    %v1899 = vunpack.c.l.b16 %v1771
    %v1900 = vunpack.c.l.b16 %v1772
    %v1901 = vunpack.c.l.b16 %v1773
    %v1902 = vunpack.c.l.b16 %v1774
    %v1903 = vunpack.c.l.b16 %v1775
    %v1904 = vunpack.c.l.b16 %v1776
    %v1905 = vunpack.c.l.b16 %v1777
    %v1906 = vunpack.c.l.b16 %v1778
    %v1907 = vunpack.c.l.b16 %v1779
    %v1908 = vunpack.c.l.b16 %v1780
    %v1909 = vunpack.c.l.b16 %v1781
    %v1910 = vunpack.c.l.b16 %v1782
    %v1911 = vunpack.c.l.b16 %v1783
    %v1912 = vunpack.c.l.b16 %v1784
    %v1913 = vunpack.c.l.b16 %v1785
    %v1914 = vunpack.c.l.b16 %v1786
    %v1915 = vunpack.c.l.b16 %v1787
    %v1916 = vunpack.c.l.b16 %v1788
    %v1917 = vunpack.c.l.b16 %v1789
    %v1918 = vunpack.c.l.b16 %v1790
    %v1919 = vunpack.c.l.b16 %v1791
    %v1920 = vunpack.c.l.b16 %v1792
    %v1921 = vunpack.c.l.b16 %v1793
    %v1922 = vunpack.c.l.b16 %v1794
    %v1923 = vunpack.c.l.b16 %v1795
    %v1924 = vunpack.c.l.b16 %v1796
    %v1925 = vunpack.c.l.b16 %v1797
    %v1926 = vunpack.c.l.b16 %v1798
    %v1927 = vpack.c.b16 %v1864, %v1863
    %v1928 = vpack.c.b16 %v1866, %v1865
    %v1929 = vpack.c.b16 %v1868, %v1867
    %v1930 = vpack.c.b16 %v1870, %v1869
    %v1931 = vpack.c.b16 %v1872, %v1871
    %v1932 = vpack.c.b16 %v1874, %v1873
    %v1933 = vpack.c.b16 %v1876, %v1875
    %v1934 = vpack.c.b16 %v1878, %v1877
    %v1935 = vpack.c.b16 %v1880, %v1879
    %v1936 = vpack.c.b16 %v1882, %v1881
    %v1937 = vpack.c.b16 %v1884, %v1883
    %v1938 = vpack.c.b16 %v1886, %v1885
    %v1939 = vpack.c.b16 %v1888, %v1887
    %v1940 = vpack.c.b16 %v1890, %v1889
    %v1941 = vpack.c.b16 %v1892, %v1891
    %v1942 = vpack.c.b16 %v1894, %v1893
    %v1943 = vpack.c.b16 %v1896, %v1895
    %v1944 = vpack.c.b16 %v1898, %v1897
    %v1945 = vpack.c.b16 %v1900, %v1899
    %v1946 = vpack.c.b16 %v1902, %v1901
    %v1947 = vpack.c.b16 %v1904, %v1903
    %v1948 = vpack.c.b16 %v1906, %v1905
    %v1949 = vpack.c.b16 %v1908, %v1907
    %v1950 = vpack.c.b16 %v1910, %v1909
    %v1951 = vpack.c.b16 %v1912, %v1911
    %v1952 = vpack.c.b16 %v1914, %v1913
    %v1953 = vpack.c.b16 %v1916, %v1915
    %v1954 = vpack.c.b16 %v1918, %v1917
    %v1955 = vpack.c.b16 %v1920, %v1919
    %v1956 = vpack.c.b16 %v1922, %v1921
    %v1957 = vpack.c.b16 %v1924, %v1923
    %v1958 = vpack.c.b16 %v1926, %v1925
    %1991 = vmatprep.subr.bf16.mxu0 0
    %1992 = vmatpush1.bf16.msra.mxu0 %v1927
    %1993 = vmatprep.subr.bf16.mxu0 0
    %1994 = vmatpush1.bf16.msra.mxu0 %v1928
    %1995 = vmatprep.subr.bf16.mxu0 0
    %1996 = vmatpush1.bf16.msra.mxu0 %v1929
    %1997 = vmatprep.subr.bf16.mxu0 0
    %1998 = vmatpush1.bf16.msra.mxu0 %v1930
    %1999 = vmatprep.subr.bf16.mxu0 0
    %2000 = vmatpush1.bf16.msra.mxu0 %v1931
    %2001 = vmatprep.subr.bf16.mxu0 0
    %2002 = vmatpush1.bf16.msra.mxu0 %v1932
    %2003 = vmatprep.subr.bf16.mxu0 0
    %2004 = vmatpush1.bf16.msra.mxu0 %v1933
    %2005 = vmatprep.subr.bf16.mxu0 0
    %2006 = vmatpush1.bf16.msra.mxu0 %v1934
    %2007 = vmatprep.subr.bf16.mxu0 0
    %2008 = vmatpush1.bf16.msra.mxu0 %v1935
    %2009 = vmatprep.subr.bf16.mxu0 0
    %2010 = vmatpush1.bf16.msra.mxu0 %v1936
    %2011 = vmatprep.subr.bf16.mxu0 0
    %2012 = vmatpush1.bf16.msra.mxu0 %v1937
    %2013 = vmatprep.subr.bf16.mxu0 0
    %2014 = vmatpush1.bf16.msra.mxu0 %v1938
    %2015 = vmatprep.subr.bf16.mxu0 0
    %2016 = vmatpush1.bf16.msra.mxu0 %v1939
    %2017 = vmatprep.subr.bf16.mxu0 0
    %2018 = vmatpush1.bf16.msra.mxu0 %v1940
    %2019 = vmatprep.subr.bf16.mxu0 0
    %2020 = vmatpush1.bf16.msra.mxu0 %v1941
    %2021 = vmatprep.subr.bf16.mxu0 0
    %2022 = vmatpush1.bf16.msra.mxu0 %v1942
    %2023 = vmatprep.mubr.bf16.mxu0 %v1732
    %2024 = vmatmul.mubr.bf16.gmra.mrb[0].mxu0 %v1731
    %v2025 = vpop.f32.mrb[0].mxu0
    %v2026 = vadd.f32 0.0, %v2025
    %v2027 = vpop.f32.mrb[0].mxu0
    %v2028 = vpop.f32.mrb[0].mxu0
    %v2029 = vadd.f32 0.0, %v2028
    %v2030 = vpop.f32.mrb[0].mxu0
    %2031 = vdwg.mxu0
    %2032 = vmatprep.subr.bf16.mxu0 0
    %2033 = vmatpush1.bf16.msra.mxu0 %v1943
    %2034 = vmatprep.subr.bf16.mxu0 0
    %2035 = vmatpush1.bf16.msra.mxu0 %v1944
    %2036 = vmatprep.subr.bf16.mxu0 0
    %2037 = vmatpush1.bf16.msra.mxu0 %v1945
    %2038 = vmatprep.subr.bf16.mxu0 0
    %2039 = vmatpush1.bf16.msra.mxu0 %v1946
    %2040 = vmatprep.subr.bf16.mxu0 0
    %2041 = vmatpush1.bf16.msra.mxu0 %v1947
    %2042 = vmatprep.subr.bf16.mxu0 0
    %2043 = vmatpush1.bf16.msra.mxu0 %v1948
    %2044 = vmatprep.subr.bf16.mxu0 0
    %2045 = vmatpush1.bf16.msra.mxu0 %v1949
    %2046 = vmatprep.subr.bf16.mxu0 0
    %2047 = vmatpush1.bf16.msra.mxu0 %v1950
    %2048 = vmatprep.subr.bf16.mxu0 0
    %2049 = vmatpush1.bf16.msra.mxu0 %v1951
    %2050 = vmatprep.subr.bf16.mxu0 0
    %2051 = vmatpush1.bf16.msra.mxu0 %v1952
    %2052 = vmatprep.subr.bf16.mxu0 0
    %2053 = vmatpush1.bf16.msra.mxu0 %v1953
    %2054 = vmatprep.subr.bf16.mxu0 0
    %2055 = vmatpush1.bf16.msra.mxu0 %v1954
    %2056 = vmatprep.subr.bf16.mxu0 0
    %2057 = vmatpush1.bf16.msra.mxu0 %v1955
    %2058 = vmatprep.subr.bf16.mxu0 0
    %2059 = vmatpush1.bf16.msra.mxu0 %v1956
    %2060 = vmatprep.subr.bf16.mxu0 0
    %2061 = vmatpush1.bf16.msra.mxu0 %v1957
    %2062 = vmatprep.subr.bf16.mxu0 0
    %2063 = vmatpush1.bf16.msra.mxu0 %v1958
    %2064 = vmatprep.mubr.bf16.mxu0 %v1734
    %2065 = vmatmul.mubr.bf16.gmra.mrb[0].mxu0 %v1733
    %v2066 = vpop.f32.mrb[0].mxu0
    %v2067 = vadd.f32 %v2026, %v2066
    %v2068 = vpop.f32.mrb[0].mxu0
    %v2069 = vpop.f32.mrb[0].mxu0
    %v2070 = vadd.f32 %v2029, %v2069
    %v2071 = vpop.f32.mrb[0].mxu0
    %2072 = vdwg.mxu0
    %v2073 = vadd.f32 %v927, %v2067
    %v2074 = vadd.f32 %v928, %v2070
    %2075 = vst.msk [vmem:[#allocation10] sm:$0xff] %vm107, %v2073
    %2076 = vst.msk [vmem:[#allocation10 + $0x8] sm:$0xff] %vm107, %v2074
    // Predicated region
    $region78: #{decoder_layer.1} parent=1 // pred_check
      _
    $region79: #{decoder_layer.1} parent=1 // pred_check_branch
      %2078 = sbr.rel (0) target = $region81
    $region80: #{decoder_layer.1} parent=1 // pred_region
      %s2080 = ssub.s32 256, 256
      %2081 = vsyncadd [#allocation4], %s2080
      %s2082 = sshll.u32 [#allocation10], 4
      %s2083 = int_to_ptr.vmem [resolvable:$true] %s2082
      %2088 = dma.vmem_to_hbm [thread:$0]  %s2083, 256, %s15, [#allocation4], 128, 128, 8
    $region81: #{decoder_layer.1} parent=1 // pred_fallthru
      _
    // Predicated region
    $region82: #{decoder_layer.1} parent=1 // pred_check
      _
    $region83: #{decoder_layer.1} parent=1 // pred_check_branch
      %2090 = sbr.rel (0) target = $region85
    $region84: #{decoder_layer.1} parent=1 // pred_region
      %2091 = dma.done [#allocation4], 256
    $region85: #{decoder_layer.1} parent=1 // pred_fallthru
      _
    %2092 = vsyncpa [#allocation3], 1
    %2093 = vsyncpa [#allocation6], 1
    %2094 = vsyncpa [#allocation9], 1
    %2095 = vsyncpa [#allocation4], 1

</llo_original>
